<compile_context>
chip_gen: v5e
topology: v5e:2x2
jax: 0.10.0
libtpu: 0.0.40
codegen_flags: <defaults>
</compile_context>

<pallas_src>
import functools
import math

import jax
import jax.numpy as jnp
from jax import lax
from jax.experimental import pallas as pl
from jax.experimental.pallas import tpu as pltpu

LANE = 128


def _round_up(x, m):
    return (x + m - 1) // m * m


def _gelu_tanh(x):
    c = math.sqrt(2.0 / math.pi)
    return 0.5 * x * (1.0 + jnp.tanh(c * (x + 0.044715 * x * x * x)))


def _vmem_capacity():
    try:
        return int(pltpu.get_tpu_info().vmem_capacity_bytes)
    except Exception:
        return 64 << 20            # conservative (v7x) fallback


# ---------------------------------------------------------------------------
# Kernels
# ---------------------------------------------------------------------------
def _conv_block_kernel(x_ref, halo_ref, scale_ref, shift_ref, w_ref, b_ref,
                       o_ref, win_ref, *, K, PAD, HALO8, TL, L, CIN, COUT,
                       FUSED, HAS_TAIL, CDTYPE):
    """K > 1 path (odd K, 'same' padding).  Block shapes:
      x_ref     : (1, TL, CIN)           centre rows of this L-tile (channels-last)
      halo_ref  : (1, 1, 2*HALO8, CIN)   HALO8 rows left of the tile + HALO8 right
      scale_ref : (1, CIN)               folded BN scale  gamma / sqrt(var + eps)
      shift_ref : (1, CIN)               folded BN shift  beta - mean * scale
      w_ref     : (K*CIN, COUT)          tap-major conv weights (MXU dtype)
      b_ref     : (1, COUT)
      o_ref     : (1, TL, COUT)
      win_ref   : (2*HALO8 + TL, CIN)    VMEM scratch: activated window (MXU dtype)
    """
    l = pl.program_id(1)
    scale = scale_ref[...]
    shift = shift_ref[...]

    # --- centre rows: fused BN + tanh-GELU in f32, one aligned store into window.
    act_c = _gelu_tanh(x_ref[0].astype(jnp.float32) * scale + shift)
    if HAS_TAIL:
        last = pl.num_programs(1) - 1

        @pl.when(l == last)
        def _():
            # Only the last tile can hold rows past L; they must be zero
            # post-activation to reproduce Conv1d 'same' zero padding.
            pos = lax.broadcasted_iota(jnp.int32, (TL, 1), 0) + l * TL
            win_ref[pl.ds(HALO8, TL), :] = jnp.where(
                pos < L, act_c, 0.0).astype(CDTYPE)

        @pl.when(l != last)
        def _():
            win_ref[pl.ds(HALO8, TL), :] = act_c.astype(CDTYPE)
    else:
        win_ref[pl.ds(HALO8, TL), :] = act_c.astype(CDTYPE)

    # --- halo rows (only 2*HALO8 of them): BN + GELU + boundary zero mask.
    halo = halo_ref[0, 0]                                   # (2*HALO8, CIN)
    act_h = _gelu_tanh(halo.astype(jnp.float32) * scale + shift)
    j = lax.broadcasted_iota(jnp.int32, (2 * HALO8, 1), 0)
    gpos = l * TL - HALO8 + j + jnp.where(j < HALO8, 0, TL)  # global position
    act_h = jnp.where((gpos >= 0) & (gpos < L), act_h, 0.0).astype(CDTYPE)
    win_ref[pl.ds(0, HALO8), :] = act_h[:HALO8, :]
    win_ref[pl.ds(HALO8 + TL, HALO8), :] = act_h[HALO8:, :]

    # --- convolution (f32 accumulation on the MXU).
    base = HALO8 - PAD
    if FUSED:
        # Small-Cin layers: lane-concat im2col -> one full-depth MXU matmul.
        patches = jnp.concatenate(
            [win_ref[pl.ds(base + k, TL), :] for k in range(K)], axis=-1)
        out = jnp.dot(patches, w_ref[...], preferred_element_type=jnp.float32)
    else:
        # Wide layers (Cin already saturates MXU depth): K accumulating matmuls,
        # no (TL, K*Cin) patches buffer.
        out = jnp.zeros((TL, COUT), jnp.float32)
        for k in range(K):
            out = out + jnp.dot(win_ref[pl.ds(base + k, TL), :],
                                w_ref[pl.ds(k * CIN, CIN), :],
                                preferred_element_type=jnp.float32)

    o_ref[...] = (out + b_ref[...])[None].astype(o_ref.dtype)


def _conv_block_kernel_k1(x_ref, scale_ref, shift_ref, w_ref, b_ref, o_ref,
                          *, CDTYPE):
    """K == 1 (pointwise) path: no halo / padding mask / window scratch needed."""
    act = _gelu_tanh(
        x_ref[0].astype(jnp.float32) * scale_ref[...] + shift_ref[...])
    out = jnp.dot(act.astype(CDTYPE), w_ref[...],
                  preferred_element_type=jnp.float32)
    o_ref[...] = (out + b_ref[...])[None].astype(o_ref.dtype)


# ---------------------------------------------------------------------------
# Tiling / VMEM sizing
# ---------------------------------------------------------------------------
def _derive_tile_l(L, N, Cin_p, Cout_p, K, HALO8, cb, xb, ob, fused):
    """Pick TL from the VMEM budget of the current TPU generation."""
    budget = _vmem_capacity() // 2
    fixed = (K * Cin_p * Cout_p * cb            # single-buffered weights
             + 4 * Cin_p * 4 + 4 * Cout_p * 4   # scale/shift/bias
             + 4 * HALO8 * Cin_p * xb)          # halo tiles (double-buffered)
    per_row = (2 * Cin_p * xb                   # x tile (double-buffered)
               + 2 * Cout_p * ob                # out tile (double-buffered)
               + Cin_p * cb                     # activated window scratch
               + Cout_p * 4                     # f32 matmul accumulator
               + Cin_p * 4)                     # f32 activation temporaries
    if fused:
        per_row += K * Cin_p * cb               # im2col patches
    avail = max(budget - fixed, 1 << 20)
    tl = max(8, (avail // per_row) // 8 * 8)
    tl = min(tl, 2048)
    if N == 1:
        # v7x megacore: with batch 1, L-tiles are the only source of
        # cross-TensorCore parallelism -> keep at least 2 tiles.
        tl = min(tl, max(8, _round_up(-(-L // 2), 8)))
    tl = min(tl, _round_up(L, 8))
    return int(tl)


def _default_vmem_limit(TL, Cin_p, Cout_p, K, HALO8, cb, xb, ob, fused):
    est = (2 * TL * Cin_p * xb
           + 2 * TL * Cout_p * ob
           + 4 * HALO8 * Cin_p * xb
           + (TL + 2 * HALO8) * Cin_p * cb
           + TL * Cout_p * 4
           + TL * Cin_p * 4
           + K * Cin_p * Cout_p * cb
           + 4 * Cin_p * 4 + 4 * Cout_p * 4)
    if fused:
        est += TL * K * Cin_p * cb
    return int(min(_vmem_capacity(), max(32 << 20, int(est * 1.5) + (4 << 20))))


# ---------------------------------------------------------------------------
# Wrappers
# ---------------------------------------------------------------------------
def conv_block_forward_nlc(x_nlc, gamma, beta, mean, var, w, b, *, eps=1e-3,
                           tl=None, mxu_dtype=jnp.bfloat16, fused_im2col=None,
                           vmem_limit_bytes=None):
    """Channels-last ConvBlock forward.  x_nlc: (N, L, Cin) -> (N, L, Cout)."""
    N, L, Cin = x_nlc.shape
    Cout, Cin_w, K = w.shape
    assert Cin_w == Cin
    assert K % 2 == 1, "padding='same' here assumes an odd kernel size"
    PAD = (K - 1) // 2
    HALO8 = _round_up(PAD, 8) if PAD > 0 else 0

    # Pad channels to lane multiples -> lane-dense unmasked stores, aligned loads.
    Cin_p = _round_up(Cin, LANE)
    Cout_p = _round_up(Cout, LANE)

    cdtype = jnp.dtype(mxu_dtype)
    cb = cdtype.itemsize
    xb = jnp.dtype(x_nlc.dtype).itemsize
    ob = xb                                       # output keeps the input dtype

    if fused_im2col is None:
        fused_im2col = Cin_p < 256                # wide layers: K accumulating dots
    if K == 1:
        fused_im2col = True

    if tl is None:
        tl = _derive_tile_l(L, N, Cin_p, Cout_p, K, HALO8, cb, xb, ob,
                            fused_im2col)
    assert tl % 8 == 0, "L tile must be a multiple of 8 (sublane alignment)"
    TL = int(tl)
    n_tiles = -(-L // TL)
    L_t = n_tiles * TL
    HAS_TAIL = (L_t != L)

    f32 = jnp.float32
    # ---- fold inference BatchNorm into per-channel scale/shift (f32).
    inv = gamma.astype(f32) * lax.rsqrt(var.astype(f32) + eps)
    scale = jnp.zeros((1, Cin_p), f32).at[0, :Cin].set(inv)
    shift = jnp.zeros((1, Cin_p), f32).at[0, :Cin].set(
        beta.astype(f32) - mean.astype(f32) * inv)

    # ---- weights: w[out, in, k] -> tap-major (K*Cin_p, Cout_p) in the MXU dtype.
    w_kic = jnp.transpose(w, (2, 1, 0)).astype(cdtype)          # (K, Cin, Cout)
    w2 = jnp.zeros((K, Cin_p, Cout_p), cdtype).at[:, :Cin, :Cout].set(w_kic)
    w2 = w2.reshape(K * Cin_p, Cout_p)
    b2 = jnp.zeros((1, Cout_p), f32).at[0, :Cout].set(b.astype(f32))

    # ---- single pad pass, only when actually needed (channel pad / ragged tail).
    if L_t != L or Cin_p != Cin:
        x_main = jnp.pad(x_nlc, ((0, 0), (0, L_t - L), (0, Cin_p - Cin)))
    else:
        x_main = x_nlc

    if vmem_limit_bytes is None:
        vmem_limit_bytes = _default_vmem_limit(TL, Cin_p, Cout_p, K, HALO8,
                                               cb, xb, ob, fused_im2col)

    if K > 1:
        # Halo rows gathered straight from the (padded) input with clamped
        # indices -- no extra full-HBM pad pass; the in-kernel position mask
        # zeroes out-of-range rows.
        starts = jnp.arange(n_tiles, dtype=jnp.int32)[:, None] * TL
        off = jnp.arange(HALO8, dtype=jnp.int32)[None, :]
        idx = jnp.concatenate([starts - HALO8 + off, starts + TL + off], axis=1)
        idx = jnp.clip(idx, 0, L_t - 1)                     # (n_tiles, 2*HALO8)
        halos = jnp.take(x_main, idx, axis=1)               # (N, n_tiles, 2*HALO8, Cin_p)

        kernel = functools.partial(
            _conv_block_kernel, K=K, PAD=PAD, HALO8=HALO8, TL=TL, L=L,
            CIN=Cin_p, COUT=Cout_p, FUSED=fused_im2col, HAS_TAIL=HAS_TAIL,
            CDTYPE=cdtype)
    else:
        halos = None
        kernel = functools.partial(_conv_block_kernel_k1, CDTYPE=cdtype)

    def _call(single_buffer_consts):
        # Loop-invariant operands (weights/bias/BN params) do not need double
        # buffering; reclaim that VMEM when the build supports pipeline_mode.
        const_kw = ({"pipeline_mode": pl.Buffered(1)}
                    if single_buffer_consts else {})
        if K > 1:
            in_specs = [
                pl.BlockSpec((1, TL, Cin_p), lambda n, l: (n, l, 0)),
                pl.BlockSpec((1, 1, 2 * HALO8, Cin_p),
                             lambda n, l: (n, l, 0, 0)),
                pl.BlockSpec((1, Cin_p), lambda n, l: (0, 0), **const_kw),
                pl.BlockSpec((1, Cin_p), lambda n, l: (0, 0), **const_kw),
                pl.BlockSpec((K * Cin_p, Cout_p), lambda n, l: (0, 0), **const_kw),
                pl.BlockSpec((1, Cout_p), lambda n, l: (0, 0), **const_kw),
            ]
            args = (x_main, halos, scale, shift, w2, b2)
            scratch = [pltpu.VMEM((TL + 2 * HALO8, Cin_p), cdtype)]
        else:
            in_specs = [
                pl.BlockSpec((1, TL, Cin_p), lambda n, l: (n, l, 0)),
                pl.BlockSpec((1, Cin_p), lambda n, l: (0, 0), **const_kw),
                pl.BlockSpec((1, Cin_p), lambda n, l: (0, 0), **const_kw),
                pl.BlockSpec((Cin_p, Cout_p), lambda n, l: (0, 0), **const_kw),
                pl.BlockSpec((1, Cout_p), lambda n, l: (0, 0), **const_kw),
            ]
            args = (x_main, scale, shift, w2, b2)
            scratch = []

        return pl.pallas_call(
            kernel,
            out_shape=jax.ShapeDtypeStruct((N, L_t, Cout_p), x_nlc.dtype),
            grid_spec=pltpu.PrefetchScalarGridSpec(
                num_scalar_prefetch=0,
                grid=(N, n_tiles),
                in_specs=in_specs,
                out_specs=pl.BlockSpec((1, TL, Cout_p), lambda n, l: (n, l, 0)),
                scratch_shapes=scratch),
            compiler_params=pltpu.CompilerParams(
                dimension_semantics=("parallel", "parallel"),
                vmem_limit_bytes=int(vmem_limit_bytes)),
        )(*args)

    try:
        out = _call(single_buffer_consts=True)
    except Exception:
        # Fallback: default double-buffered constant operands (pure VMEM cost,
        # numerically identical) if this JAX build rejects pl.Buffered(1).
        out = _call(single_buffer_consts=False)

    return out[:, :L, :Cout]


def conv_block_forward(x_ncl, gamma, beta, mean, var, w, b, *, eps=1e-3,
                       tl=None, mxu_dtype=jnp.bfloat16, fused_im2col=None):
    """PyTorch-facing NCL interface: x (N, Cin, L) -> (N, Cout, L)."""
    # TODO(synk): in a channels-last Borzoi trunk these two edge transposes
    #             disappear; call conv_block_forward_nlc directly.
    x_nlc = jnp.transpose(x_ncl, (0, 2, 1))
    y = conv_block_forward_nlc(x_nlc, gamma, beta, mean, var, w, b, eps=eps,
                               tl=tl, mxu_dtype=mxu_dtype,
                               fused_im2col=fused_im2col)
    return jnp.transpose(y, (0, 2, 1))


def _reference(x, gamma, beta, mean, var, w, b, eps=1e-3):
    """Pure-JAX reference matching BatchNorm1d(eval) + GELU(tanh) + Conv1d('same')."""
    inv = gamma * lax.rsqrt(var + eps)
    xn = (x - mean[None, :, None]) * inv[None, :, None] + beta[None, :, None]
    a = _gelu_tanh(xn)
    K = w.shape[-1]
    PAD = (K - 1) // 2
    conv = lax.conv_general_dilated(
        a, w, window_strides=(1,), padding=[(PAD, PAD)],
        dimension_numbers=("NCH", "OIH", "NCH"))
    return conv + b[None, :, None]


if __name__ == "__main__":
    key = jax.random.PRNGKey(0)
    ks = jax.random.split(key, 7)

    # Small, module-consistent shapes.  L=20 with tl=8 exercises multi-tile
    # halos, the ragged-tail mask and channel padding (32->128, 64->128).
    N, Cin, Cout, K, L = 2, 32, 64, 5, 20

    x = jax.random.normal(ks[0], (N, Cin, L), dtype=jnp.float32)
    gamma = jax.random.uniform(ks[1], (Cin,), jnp.float32, 0.5, 1.5)
    beta = 0.1 * jax.random.normal(ks[2], (Cin,), jnp.float32)
    mean = 0.1 * jax.random.normal(ks[3], (Cin,), jnp.float32)
    var = jax.random.uniform(ks[4], (Cin,), jnp.float32, 0.5, 1.5)

    bound = 1.0 / math.sqrt(Cin * K)
    w = jax.random.uniform(ks[5], (Cout, Cin, K), jnp.float32, -bound, bound)
    b = jax.random.uniform(ks[6], (Cout,), jnp.float32, -bound, bound)

    ref = jax.block_until_ready(_reference(x, gamma, beta, mean, var, w, b))

    # 1) exactness: f32 MXU path, fused-im2col (small-Cin) formulation.
    out = jax.block_until_ready(conv_block_forward(
        x, gamma, beta, mean, var, w, b, tl=8, mxu_dtype=jnp.float32,
        fused_im2col=True))
    assert out.shape == (N, Cout, L), out.shape
    err = float(jnp.max(jnp.abs(out - ref)))
    assert err < 2e-4, ("f32 fused im2col", err)

    # 2) exactness: f32 MXU path, K-accumulate (wide-layer) formulation.
    out = jax.block_until_ready(conv_block_forward(
        x, gamma, beta, mean, var, w, b, tl=8, mxu_dtype=jnp.float32,
        fused_im2col=False))
    err = float(jnp.max(jnp.abs(out - ref)))
    assert err < 2e-4, ("f32 k-accumulate", err)

    # 3) default performance path: bf16 MXU operands, f32 accumulation,
    #    auto tile size / auto formulation.
    out = jax.block_until_ready(conv_block_forward(
        x, gamma, beta, mean, var, w, b))
    err = float(jnp.max(jnp.abs(out - ref)))
    assert err < 3e-2, ("bf16 default", err)

    # 4) kernel_size=1 (pointwise) variant of the module.
    w1 = jax.random.uniform(ks[5], (Cout, Cin, 1), jnp.float32, -bound, bound)
    ref1 = jax.block_until_ready(_reference(x, gamma, beta, mean, var, w1, b))
    out1 = jax.block_until_ready(conv_block_forward(
        x, gamma, beta, mean, var, w1, b, mxu_dtype=jnp.float32))
    err = float(jnp.max(jnp.abs(out1 - ref1)))
    assert err < 2e-4, ("k=1", err)

    print("KERNEL_OK")
</pallas_src>

<mosaic_0001>
module attributes {stable_mosaic.version = 11 : i64} {
  func.func @_conv_block_kernel(%arg0: i32, %arg1: i32, %arg2: memref<1x8x128xf32, #tpu.memory_space<vmem>>, %arg3: memref<1x1x16x128xf32, #tpu.memory_space<vmem>>, %arg4: memref<1x128xf32, #tpu.memory_space<vmem>>, %arg5: memref<1x128xf32, #tpu.memory_space<vmem>>, %arg6: memref<640x128xf32, #tpu.memory_space<vmem>>, %arg7: memref<1x128xf32, #tpu.memory_space<vmem>>, %arg8: memref<1x8x128xf32, #tpu.memory_space<vmem>>, %arg9: memref<24x128xf32, #tpu.memory_space<vmem>>) attributes {dimension_semantics = [#tpu.dimension_semantics<parallel>, #tpu.dimension_semantics<parallel>], iteration_bounds = array<i64: 2, 3>, scalar_prefetch = 0 : i64, scratch_operands = 1 : i64, tpu.core_type = #tpu.core_type<tc>, window_params = [{transform_indices = @transform_0, window_bounds = array<i64: 1, 8, 128>}, {transform_indices = @transform_1, window_bounds = array<i64: 1, 1, 16, 128>}, {pipeline_mode = #tpu.pipeline_mode<synchronous>, transform_indices = @transform_2, window_bounds = array<i64: 1, 128>}, {pipeline_mode = #tpu.pipeline_mode<synchronous>, transform_indices = @transform_3, window_bounds = array<i64: 1, 128>}, {pipeline_mode = #tpu.pipeline_mode<synchronous>, transform_indices = @transform_4, window_bounds = array<i64: 640, 128>}, {pipeline_mode = #tpu.pipeline_mode<synchronous>, transform_indices = @transform_5, window_bounds = array<i64: 1, 128>}, {transform_indices = @transform_6, window_bounds = array<i64: 1, 8, 128>}]} {
    %c0 = arith.constant 0 : index
    %c0_0 = arith.constant 0 : index
    %0 = vector.load %arg4[%c0, %c0_0] : memref<1x128xf32, #tpu.memory_space<vmem>>, vector<1x128xf32>
    %c0_1 = arith.constant 0 : index
    %c0_2 = arith.constant 0 : index
    %1 = vector.load %arg5[%c0_1, %c0_2] : memref<1x128xf32, #tpu.memory_space<vmem>>, vector<1x128xf32>
    %c0_3 = arith.constant 0 : index
    %c0_4 = arith.constant 0 : index
    %c0_5 = arith.constant 0 : index
    %2 = vector.load %arg2[%c0_3, %c0_4, %c0_5] : memref<1x8x128xf32, #tpu.memory_space<vmem>>, vector<1x8x128xf32>
    %3 = vector.shape_cast %2 : vector<1x8x128xf32> to vector<8x128xf32>
    %4 = vector.broadcast %0 : vector<1x128xf32> to vector<8x128xf32>
    %5 = arith.mulf %3, %4 : vector<8x128xf32>
    %6 = vector.broadcast %1 : vector<1x128xf32> to vector<8x128xf32>
    %7 = arith.addf %5, %6 : vector<8x128xf32>
    %cst = arith.constant 5.000000e-01 : f32
    %8 = vector.broadcast %cst : f32 to vector<8x128xf32>
    %9 = arith.mulf %8, %7 : vector<8x128xf32>
    %cst_6 = arith.constant 4.471500e-02 : f32
    %10 = vector.broadcast %cst_6 : f32 to vector<8x128xf32>
    %11 = arith.mulf %10, %7 : vector<8x128xf32>
    %12 = arith.mulf %11, %7 : vector<8x128xf32>
    %13 = arith.mulf %12, %7 : vector<8x128xf32>
    %14 = arith.addf %7, %13 : vector<8x128xf32>
    %cst_7 = arith.constant 0.797884583 : f32
    %15 = vector.broadcast %cst_7 : f32 to vector<8x128xf32>
    %16 = arith.mulf %15, %14 : vector<8x128xf32>
    %17 = math.tanh %16 : vector<8x128xf32>
    %cst_8 = arith.constant 1.000000e+00 : f32
    %18 = vector.broadcast %cst_8 : f32 to vector<8x128xf32>
    %19 = arith.addf %18, %17 : vector<8x128xf32>
    %20 = arith.mulf %9, %19 : vector<8x128xf32>
    %c2_i32 = arith.constant 2 : i32
    %21 = arith.cmpi eq, %arg1, %c2_i32 : i32
    %22 = arith.extui %21 : i1 to i32
    %c0_i32 = arith.constant 0 : i32
    %23 = arith.cmpi ne, %22, %c0_i32 : i32
    scf.if %23 {
      %83 = tpu.iota {dimensions = array<i32: 0>} : vector<8x1xi32>
      %c8_i32_41 = arith.constant 8 : i32
      %84 = arith.muli %arg1, %c8_i32_41 : i32
      %85 = vector.broadcast %84 : i32 to vector<8x1xi32>
      %86 = arith.addi %83, %85 : vector<8x1xi32>
      %c20_i32_42 = arith.constant 20 : i32
      %87 = vector.broadcast %c20_i32_42 : i32 to vector<8x1xi32>
      %88 = arith.cmpi slt, %86, %87 : vector<8x1xi32>
      %cst_43 = arith.constant 0.000000e+00 : f32
      %89 = vector.shape_cast %88 : vector<8x1xi1> to vector<8x1xi1>
      %90 = vector.broadcast %89 : vector<8x1xi1> to vector<8x128xi1>
      %91 = vector.broadcast %cst_43 : f32 to vector<8x128xf32>
      %92 = arith.select %90, %20, %91 : vector<8x128xi1>, vector<8x128xf32>
      %c8_44 = arith.constant 8 : index
      %c0_45 = arith.constant 0 : index
      %93 = vector.load %arg9[%c8_44, %c0_45] : memref<24x128xf32, #tpu.memory_space<vmem>>, vector<8x128xf32>
      tpu.vector_store %arg9[%c8_44, %c0_45], %92 {strides = array<i32>} : memref<24x128xf32, #tpu.memory_space<vmem>>, vector<8x128xf32>,
    } else {
    }
    %c2_i32_9 = arith.constant 2 : i32
    %24 = arith.cmpi ne, %arg1, %c2_i32_9 : i32
    %25 = arith.extui %24 : i1 to i32
    %c0_i32_10 = arith.constant 0 : i32
    %26 = arith.cmpi ne, %25, %c0_i32_10 : i32
    scf.if %26 {
      %c8_41 = arith.constant 8 : index
      %c0_42 = arith.constant 0 : index
      %83 = vector.load %arg9[%c8_41, %c0_42] : memref<24x128xf32, #tpu.memory_space<vmem>>, vector<8x128xf32>
      tpu.vector_store %arg9[%c8_41, %c0_42], %20 {strides = array<i32>} : memref<24x128xf32, #tpu.memory_space<vmem>>, vector<8x128xf32>,
    } else {
    }
    %c0_11 = arith.constant 0 : index
    %c0_12 = arith.constant 0 : index
    %c0_13 = arith.constant 0 : index
    %c0_14 = arith.constant 0 : index
    %27 = vector.load %arg3[%c0_11, %c0_12, %c0_13, %c0_14] : memref<1x1x16x128xf32, #tpu.memory_space<vmem>>, vector<1x1x16x128xf32>
    %28 = vector.shape_cast %27 : vector<1x1x16x128xf32> to vector<16x128xf32>
    %29 = vector.broadcast %0 : vector<1x128xf32> to vector<16x128xf32>
    %30 = arith.mulf %28, %29 : vector<16x128xf32>
    %31 = vector.broadcast %1 : vector<1x128xf32> to vector<16x128xf32>
    %32 = arith.addf %30, %31 : vector<16x128xf32>
    %cst_15 = arith.constant 5.000000e-01 : f32
    %33 = vector.broadcast %cst_15 : f32 to vector<16x128xf32>
    %34 = arith.mulf %33, %32 : vector<16x128xf32>
    %cst_16 = arith.constant 4.471500e-02 : f32
    %35 = vector.broadcast %cst_16 : f32 to vector<16x128xf32>
    %36 = arith.mulf %35, %32 : vector<16x128xf32>
    %37 = arith.mulf %36, %32 : vector<16x128xf32>
    %38 = arith.mulf %37, %32 : vector<16x128xf32>
    %39 = arith.addf %32, %38 : vector<16x128xf32>
    %cst_17 = arith.constant 0.797884583 : f32
    %40 = vector.broadcast %cst_17 : f32 to vector<16x128xf32>
    %41 = arith.mulf %40, %39 : vector<16x128xf32>
    %42 = math.tanh %41 : vector<16x128xf32>
    %cst_18 = arith.constant 1.000000e+00 : f32
    %43 = vector.broadcast %cst_18 : f32 to vector<16x128xf32>
    %44 = arith.addf %43, %42 : vector<16x128xf32>
    %45 = arith.mulf %34, %44 : vector<16x128xf32>
    %46 = tpu.iota {dimensions = array<i32: 0>} : vector<16x1xi32>
    %c8_i32 = arith.constant 8 : i32
    %47 = arith.muli %arg1, %c8_i32 : i32
    %c8_i32_19 = arith.constant 8 : i32
    %48 = arith.subi %47, %c8_i32_19 : i32
    %49 = vector.broadcast %48 : i32 to vector<16x1xi32>
    %50 = arith.addi %49, %46 : vector<16x1xi32>
    %c8_i32_20 = arith.constant 8 : i32
    %51 = vector.broadcast %c8_i32_20 : i32 to vector<16x1xi32>
    %52 = arith.cmpi slt, %46, %51 : vector<16x1xi32>
    %c0_i32_21 = arith.constant 0 : i32
    %c8_i32_22 = arith.constant 8 : i32
    %53 = vector.broadcast %c0_i32_21 : i32 to vector<16x1xi32>
    %54 = vector.broadcast %c8_i32_22 : i32 to vector<16x1xi32>
    %55 = arith.select %52, %53, %54 : vector<16x1xi1>, vector<16x1xi32>
    %56 = arith.addi %50, %55 : vector<16x1xi32>
    %c0_i32_23 = arith.constant 0 : i32
    %57 = vector.broadcast %c0_i32_23 : i32 to vector<16x1xi32>
    %58 = arith.cmpi sge, %56, %57 : vector<16x1xi32>
    %c20_i32 = arith.constant 20 : i32
    %59 = vector.broadcast %c20_i32 : i32 to vector<16x1xi32>
    %60 = arith.cmpi slt, %56, %59 : vector<16x1xi32>
    %61 = arith.andi %58, %60 : vector<16x1xi1>
    %cst_24 = arith.constant 0.000000e+00 : f32
    %62 = vector.shape_cast %61 : vector<16x1xi1> to vector<16x1xi1>
    %63 = vector.broadcast %62 : vector<16x1xi1> to vector<16x128xi1>
    %64 = vector.broadcast %cst_24 : f32 to vector<16x128xf32>
    %65 = arith.select %63, %45, %64 : vector<16x128xi1>, vector<16x128xf32>
    %66 = vector.extract_strided_slice %65 {offsets = [0, 0], sizes = [8, 128], strides = [1, 1]} : vector<16x128xf32> to vector<8x128xf32>
    %c0_25 = arith.constant 0 : index
    %c0_26 = arith.constant 0 : index
    %67 = vector.load %arg9[%c0_25, %c0_26] : memref<24x128xf32, #tpu.memory_space<vmem>>, vector<8x128xf32>
    tpu.vector_store %arg9[%c0_25, %c0_26], %66 {strides = array<i32>} : memref<24x128xf32, #tpu.memory_space<vmem>>, vector<8x128xf32>,
    %68 = vector.extract_strided_slice %65 {offsets = [8, 0], sizes = [8, 128], strides = [1, 1]} : vector<16x128xf32> to vector<8x128xf32>
    %c16 = arith.constant 16 : index
    %c0_27 = arith.constant 0 : index
    %69 = vector.load %arg9[%c16, %c0_27] : memref<24x128xf32, #tpu.memory_space<vmem>>, vector<8x128xf32>
    tpu.vector_store %arg9[%c16, %c0_27], %68 {strides = array<i32>} : memref<24x128xf32, #tpu.memory_space<vmem>>, vector<8x128xf32>,
    %c6 = arith.constant 6 : index
    %c0_28 = arith.constant 0 : index
    %70 = vector.load %arg9[%c6, %c0_28] : memref<24x128xf32, #tpu.memory_space<vmem>>, vector<8x128xf32>
    %c7 = arith.constant 7 : index
    %c0_29 = arith.constant 0 : index
    %71 = vector.load %arg9[%c7, %c0_29] : memref<24x128xf32, #tpu.memory_space<vmem>>, vector<8x128xf32>
    %c8 = arith.constant 8 : index
    %c0_30 = arith.constant 0 : index
    %72 = vector.load %arg9[%c8, %c0_30] : memref<24x128xf32, #tpu.memory_space<vmem>>, vector<8x128xf32>
    %c9 = arith.constant 9 : index
    %c0_31 = arith.constant 0 : index
    %73 = vector.load %arg9[%c9, %c0_31] : memref<24x128xf32, #tpu.memory_space<vmem>>, vector<8x128xf32>
    %c10 = arith.constant 10 : index
    %c0_32 = arith.constant 0 : index
    %74 = vector.load %arg9[%c10, %c0_32] : memref<24x128xf32, #tpu.memory_space<vmem>>, vector<8x128xf32>
    %75 = tpu.concatenate %70, %71, %72, %73, %74 in 1 : vector<8x128xf32>, vector<8x128xf32>, vector<8x128xf32>, vector<8x128xf32>, vector<8x128xf32> -> vector<8x640xf32>
    %c0_33 = arith.constant 0 : index
    %c0_34 = arith.constant 0 : index
    %76 = vector.load %arg6[%c0_33, %c0_34] : memref<640x128xf32, #tpu.memory_space<vmem>>, vector<640x128xf32>
    %cst_35 = arith.constant dense<0.000000e+00> : vector<8x128xf32>
    %77 = tpu.matmul %75, %76, %cst_35 {dimension_numbers = #tpu.dot_dimension_numbers<[1], [0], [0], [1], [0, 0, 1, 1], [], []>} : vector<8x640xf32>, vector<640x128xf32>, vector<8x128xf32> -> vector<8x128xf32>
    %c0_36 = arith.constant 0 : index
    %c0_37 = arith.constant 0 : index
    %78 = vector.load %arg7[%c0_36, %c0_37] : memref<1x128xf32, #tpu.memory_space<vmem>>, vector<1x128xf32>
    %79 = vector.broadcast %78 : vector<1x128xf32> to vector<8x128xf32>
    %80 = arith.addf %77, %79 : vector<8x128xf32>
    %81 = vector.shape_cast %80 : vector<8x128xf32> to vector<1x8x128xf32>
    %c0_38 = arith.constant 0 : index
    %c0_39 = arith.constant 0 : index
    %c0_40 = arith.constant 0 : index
    %82 = vector.load %arg8[%c0_38, %c0_39, %c0_40] : memref<1x8x128xf32, #tpu.memory_space<vmem>>, vector<1x8x128xf32>
    tpu.vector_store %arg8[%c0_38, %c0_39, %c0_40], %81 {strides = array<i32>} : memref<1x8x128xf32, #tpu.memory_space<vmem>>, vector<1x8x128xf32>,
    return
  }
  func.func @transform_0(%arg0: i32, %arg1: i32) -> (i32, i32, i32) {
    %c0_i32 = arith.constant 0 : i32
    %c0_i32_0 = arith.constant 0 : i32
    return %arg0, %arg1, %c0_i32 : i32, i32, i32
  }
  func.func @transform_1(%arg0: i32, %arg1: i32) -> (i32, i32, i32, i32) {
    %c0_i32 = arith.constant 0 : i32
    %c0_i32_0 = arith.constant 0 : i32
    %c0_i32_1 = arith.constant 0 : i32
    return %arg0, %arg1, %c0_i32, %c0_i32_0 : i32, i32, i32, i32
  }
  func.func @transform_2(%arg0: i32, %arg1: i32) -> (i32, i32) {
    %c0_i32 = arith.constant 0 : i32
    %c0_i32_0 = arith.constant 0 : i32
    %c0_i32_1 = arith.constant 0 : i32
    return %c0_i32, %c0_i32_0 : i32, i32
  }
  func.func @transform_3(%arg0: i32, %arg1: i32) -> (i32, i32) {
    %c0_i32 = arith.constant 0 : i32
    %c0_i32_0 = arith.constant 0 : i32
    %c0_i32_1 = arith.constant 0 : i32
    return %c0_i32, %c0_i32_0 : i32, i32
  }
  func.func @transform_4(%arg0: i32, %arg1: i32) -> (i32, i32) {
    %c0_i32 = arith.constant 0 : i32
    %c0_i32_0 = arith.constant 0 : i32
    %c0_i32_1 = arith.constant 0 : i32
    return %c0_i32, %c0_i32_0 : i32, i32
  }
  func.func @transform_5(%arg0: i32, %arg1: i32) -> (i32, i32) {
    %c0_i32 = arith.constant 0 : i32
    %c0_i32_0 = arith.constant 0 : i32
    %c0_i32_1 = arith.constant 0 : i32
    return %c0_i32, %c0_i32_0 : i32, i32
  }
  func.func @transform_6(%arg0: i32, %arg1: i32) -> (i32, i32, i32) {
    %c0_i32 = arith.constant 0 : i32
    %c0_i32_0 = arith.constant 0 : i32
    return %arg0, %arg1, %c0_i32 : i32, i32, i32
  }
}

module attributes {stable_mosaic.version = 11 : i64} {
  func.func @_conv_block_kernel(%arg0: i32, %arg1: i32, %arg2: memref<1x8x128xf32, #tpu.memory_space<vmem>>, %arg3: memref<1x1x16x128xf32, #tpu.memory_space<vmem>>, %arg4: memref<1x128xf32, #tpu.memory_space<vmem>>, %arg5: memref<1x128xf32, #tpu.memory_space<vmem>>, %arg6: memref<640x128xf32, #tpu.memory_space<vmem>>, %arg7: memref<1x128xf32, #tpu.memory_space<vmem>>, %arg8: memref<1x8x128xf32, #tpu.memory_space<vmem>>, %arg9: memref<24x128xf32, #tpu.memory_space<vmem>>) attributes {dimension_semantics = [#tpu.dimension_semantics<parallel>, #tpu.dimension_semantics<parallel>], iteration_bounds = array<i64: 2, 3>, scalar_prefetch = 0 : i64, scratch_operands = 1 : i64, tpu.core_type = #tpu.core_type<tc>, window_params = [{transform_indices = @transform_0, window_bounds = array<i64: 1, 8, 128>}, {transform_indices = @transform_1, window_bounds = array<i64: 1, 1, 16, 128>}, {pipeline_mode = #tpu.pipeline_mode<synchronous>, transform_indices = @transform_2, window_bounds = array<i64: 1, 128>}, {pipeline_mode = #tpu.pipeline_mode<synchronous>, transform_indices = @transform_3, window_bounds = array<i64: 1, 128>}, {pipeline_mode = #tpu.pipeline_mode<synchronous>, transform_indices = @transform_4, window_bounds = array<i64: 640, 128>}, {pipeline_mode = #tpu.pipeline_mode<synchronous>, transform_indices = @transform_5, window_bounds = array<i64: 1, 128>}, {transform_indices = @transform_6, window_bounds = array<i64: 1, 8, 128>}]} {
    %c0 = arith.constant 0 : index
    %c0_0 = arith.constant 0 : index
    %0 = vector.load %arg4[%c0, %c0_0] : memref<1x128xf32, #tpu.memory_space<vmem>>, vector<1x128xf32>
    %c0_1 = arith.constant 0 : index
    %c0_2 = arith.constant 0 : index
    %1 = vector.load %arg5[%c0_1, %c0_2] : memref<1x128xf32, #tpu.memory_space<vmem>>, vector<1x128xf32>
    %c0_3 = arith.constant 0 : index
    %c0_4 = arith.constant 0 : index
    %c0_5 = arith.constant 0 : index
    %2 = vector.load %arg2[%c0_3, %c0_4, %c0_5] : memref<1x8x128xf32, #tpu.memory_space<vmem>>, vector<1x8x128xf32>
    %3 = vector.shape_cast %2 : vector<1x8x128xf32> to vector<8x128xf32>
    %4 = vector.broadcast %0 : vector<1x128xf32> to vector<8x128xf32>
    %5 = arith.mulf %3, %4 : vector<8x128xf32>
    %6 = vector.broadcast %1 : vector<1x128xf32> to vector<8x128xf32>
    %7 = arith.addf %5, %6 : vector<8x128xf32>
    %cst = arith.constant 5.000000e-01 : f32
    %8 = vector.broadcast %cst : f32 to vector<8x128xf32>
    %9 = arith.mulf %8, %7 : vector<8x128xf32>
    %cst_6 = arith.constant 4.471500e-02 : f32
    %10 = vector.broadcast %cst_6 : f32 to vector<8x128xf32>
    %11 = arith.mulf %10, %7 : vector<8x128xf32>
    %12 = arith.mulf %11, %7 : vector<8x128xf32>
    %13 = arith.mulf %12, %7 : vector<8x128xf32>
    %14 = arith.addf %7, %13 : vector<8x128xf32>
    %cst_7 = arith.constant 0.797884583 : f32
    %15 = vector.broadcast %cst_7 : f32 to vector<8x128xf32>
    %16 = arith.mulf %15, %14 : vector<8x128xf32>
    %17 = math.tanh %16 : vector<8x128xf32>
    %cst_8 = arith.constant 1.000000e+00 : f32
    %18 = vector.broadcast %cst_8 : f32 to vector<8x128xf32>
    %19 = arith.addf %18, %17 : vector<8x128xf32>
    %20 = arith.mulf %9, %19 : vector<8x128xf32>
    %c2_i32 = arith.constant 2 : i32
    %21 = arith.cmpi eq, %arg1, %c2_i32 : i32
    %22 = arith.extui %21 : i1 to i32
    %c0_i32 = arith.constant 0 : i32
    %23 = arith.cmpi ne, %22, %c0_i32 : i32
    scf.if %23 {
      %83 = tpu.iota {dimensions = array<i32: 0>} : vector<8x1xi32>
      %c8_i32_41 = arith.constant 8 : i32
      %84 = arith.muli %arg1, %c8_i32_41 : i32
      %85 = vector.broadcast %84 : i32 to vector<8x1xi32>
      %86 = arith.addi %83, %85 : vector<8x1xi32>
      %c20_i32_42 = arith.constant 20 : i32
      %87 = vector.broadcast %c20_i32_42 : i32 to vector<8x1xi32>
      %88 = arith.cmpi slt, %86, %87 : vector<8x1xi32>
      %cst_43 = arith.constant 0.000000e+00 : f32
      %89 = vector.shape_cast %88 : vector<8x1xi1> to vector<8x1xi1>
      %90 = vector.broadcast %89 : vector<8x1xi1> to vector<8x128xi1>
      %91 = vector.broadcast %cst_43 : f32 to vector<8x128xf32>
      %92 = arith.select %90, %20, %91 : vector<8x128xi1>, vector<8x128xf32>
      %c8_44 = arith.constant 8 : index
      %c0_45 = arith.constant 0 : index
      %93 = vector.load %arg9[%c8_44, %c0_45] : memref<24x128xf32, #tpu.memory_space<vmem>>, vector<8x128xf32>
      tpu.vector_store %arg9[%c8_44, %c0_45], %92 {strides = array<i32>} : memref<24x128xf32, #tpu.memory_space<vmem>>, vector<8x128xf32>,
    } else {
    }
    %c2_i32_9 = arith.constant 2 : i32
    %24 = arith.cmpi ne, %arg1, %c2_i32_9 : i32
    %25 = arith.extui %24 : i1 to i32
    %c0_i32_10 = arith.constant 0 : i32
    %26 = arith.cmpi ne, %25, %c0_i32_10 : i32
    scf.if %26 {
      %c8_41 = arith.constant 8 : index
      %c0_42 = arith.constant 0 : index
      %83 = vector.load %arg9[%c8_41, %c0_42] : memref<24x128xf32, #tpu.memory_space<vmem>>, vector<8x128xf32>
      tpu.vector_store %arg9[%c8_41, %c0_42], %20 {strides = array<i32>} : memref<24x128xf32, #tpu.memory_space<vmem>>, vector<8x128xf32>,
    } else {
    }
    %c0_11 = arith.constant 0 : index
    %c0_12 = arith.constant 0 : index
    %c0_13 = arith.constant 0 : index
    %c0_14 = arith.constant 0 : index
    %27 = vector.load %arg3[%c0_11, %c0_12, %c0_13, %c0_14] : memref<1x1x16x128xf32, #tpu.memory_space<vmem>>, vector<1x1x16x128xf32>
    %28 = vector.shape_cast %27 : vector<1x1x16x128xf32> to vector<16x128xf32>
    %29 = vector.broadcast %0 : vector<1x128xf32> to vector<16x128xf32>
    %30 = arith.mulf %28, %29 : vector<16x128xf32>
    %31 = vector.broadcast %1 : vector<1x128xf32> to vector<16x128xf32>
    %32 = arith.addf %30, %31 : vector<16x128xf32>
    %cst_15 = arith.constant 5.000000e-01 : f32
    %33 = vector.broadcast %cst_15 : f32 to vector<16x128xf32>
    %34 = arith.mulf %33, %32 : vector<16x128xf32>
    %cst_16 = arith.constant 4.471500e-02 : f32
    %35 = vector.broadcast %cst_16 : f32 to vector<16x128xf32>
    %36 = arith.mulf %35, %32 : vector<16x128xf32>
    %37 = arith.mulf %36, %32 : vector<16x128xf32>
    %38 = arith.mulf %37, %32 : vector<16x128xf32>
    %39 = arith.addf %32, %38 : vector<16x128xf32>
    %cst_17 = arith.constant 0.797884583 : f32
    %40 = vector.broadcast %cst_17 : f32 to vector<16x128xf32>
    %41 = arith.mulf %40, %39 : vector<16x128xf32>
    %42 = math.tanh %41 : vector<16x128xf32>
    %cst_18 = arith.constant 1.000000e+00 : f32
    %43 = vector.broadcast %cst_18 : f32 to vector<16x128xf32>
    %44 = arith.addf %43, %42 : vector<16x128xf32>
    %45 = arith.mulf %34, %44 : vector<16x128xf32>
    %46 = tpu.iota {dimensions = array<i32: 0>} : vector<16x1xi32>
    %c8_i32 = arith.constant 8 : i32
    %47 = arith.muli %arg1, %c8_i32 : i32
    %c8_i32_19 = arith.constant 8 : i32
    %48 = arith.subi %47, %c8_i32_19 : i32
    %49 = vector.broadcast %48 : i32 to vector<16x1xi32>
    %50 = arith.addi %49, %46 : vector<16x1xi32>
    %c8_i32_20 = arith.constant 8 : i32
    %51 = vector.broadcast %c8_i32_20 : i32 to vector<16x1xi32>
    %52 = arith.cmpi slt, %46, %51 : vector<16x1xi32>
    %c0_i32_21 = arith.constant 0 : i32
    %c8_i32_22 = arith.constant 8 : i32
    %53 = vector.broadcast %c0_i32_21 : i32 to vector<16x1xi32>
    %54 = vector.broadcast %c8_i32_22 : i32 to vector<16x1xi32>
    %55 = arith.select %52, %53, %54 : vector<16x1xi1>, vector<16x1xi32>
    %56 = arith.addi %50, %55 : vector<16x1xi32>
    %c0_i32_23 = arith.constant 0 : i32
    %57 = vector.broadcast %c0_i32_23 : i32 to vector<16x1xi32>
    %58 = arith.cmpi sge, %56, %57 : vector<16x1xi32>
    %c20_i32 = arith.constant 20 : i32
    %59 = vector.broadcast %c20_i32 : i32 to vector<16x1xi32>
    %60 = arith.cmpi slt, %56, %59 : vector<16x1xi32>
    %61 = arith.andi %58, %60 : vector<16x1xi1>
    %cst_24 = arith.constant 0.000000e+00 : f32
    %62 = vector.shape_cast %61 : vector<16x1xi1> to vector<16x1xi1>
    %63 = vector.broadcast %62 : vector<16x1xi1> to vector<16x128xi1>
    %64 = vector.broadcast %cst_24 : f32 to vector<16x128xf32>
    %65 = arith.select %63, %45, %64 : vector<16x128xi1>, vector<16x128xf32>
    %66 = vector.extract_strided_slice %65 {offsets = [0, 0], sizes = [8, 128], strides = [1, 1]} : vector<16x128xf32> to vector<8x128xf32>
    %c0_25 = arith.constant 0 : index
    %c0_26 = arith.constant 0 : index
    %67 = vector.load %arg9[%c0_25, %c0_26] : memref<24x128xf32, #tpu.memory_space<vmem>>, vector<8x128xf32>
    tpu.vector_store %arg9[%c0_25, %c0_26], %66 {strides = array<i32>} : memref<24x128xf32, #tpu.memory_space<vmem>>, vector<8x128xf32>,
    %68 = vector.extract_strided_slice %65 {offsets = [8, 0], sizes = [8, 128], strides = [1, 1]} : vector<16x128xf32> to vector<8x128xf32>
    %c16 = arith.constant 16 : index
    %c0_27 = arith.constant 0 : index
    %69 = vector.load %arg9[%c16, %c0_27] : memref<24x128xf32, #tpu.memory_space<vmem>>, vector<8x128xf32>
    tpu.vector_store %arg9[%c16, %c0_27], %68 {strides = array<i32>} : memref<24x128xf32, #tpu.memory_space<vmem>>, vector<8x128xf32>,
    %c6 = arith.constant 6 : index
    %c0_28 = arith.constant 0 : index
    %70 = vector.load %arg9[%c6, %c0_28] : memref<24x128xf32, #tpu.memory_space<vmem>>, vector<8x128xf32>
    %c7 = arith.constant 7 : index
    %c0_29 = arith.constant 0 : index
    %71 = vector.load %arg9[%c7, %c0_29] : memref<24x128xf32, #tpu.memory_space<vmem>>, vector<8x128xf32>
    %c8 = arith.constant 8 : index
    %c0_30 = arith.constant 0 : index
    %72 = vector.load %arg9[%c8, %c0_30] : memref<24x128xf32, #tpu.memory_space<vmem>>, vector<8x128xf32>
    %c9 = arith.constant 9 : index
    %c0_31 = arith.constant 0 : index
    %73 = vector.load %arg9[%c9, %c0_31] : memref<24x128xf32, #tpu.memory_space<vmem>>, vector<8x128xf32>
    %c10 = arith.constant 10 : index
    %c0_32 = arith.constant 0 : index
    %74 = vector.load %arg9[%c10, %c0_32] : memref<24x128xf32, #tpu.memory_space<vmem>>, vector<8x128xf32>
    %75 = tpu.concatenate %70, %71, %72, %73, %74 in 1 : vector<8x128xf32>, vector<8x128xf32>, vector<8x128xf32>, vector<8x128xf32>, vector<8x128xf32> -> vector<8x640xf32>
    %c0_33 = arith.constant 0 : index
    %c0_34 = arith.constant 0 : index
    %76 = vector.load %arg6[%c0_33, %c0_34] : memref<640x128xf32, #tpu.memory_space<vmem>>, vector<640x128xf32>
    %cst_35 = arith.constant dense<0.000000e+00> : vector<8x128xf32>
    %77 = tpu.matmul %75, %76, %cst_35 {dimension_numbers = #tpu.dot_dimension_numbers<[1], [0], [0], [1], [0, 0, 1, 1], [], []>} : vector<8x640xf32>, vector<640x128xf32>, vector<8x128xf32> -> vector<8x128xf32>
    %c0_36 = arith.constant 0 : index
    %c0_37 = arith.constant 0 : index
    %78 = vector.load %arg7[%c0_36, %c0_37] : memref<1x128xf32, #tpu.memory_space<vmem>>, vector<1x128xf32>
    %79 = vector.broadcast %78 : vector<1x128xf32> to vector<8x128xf32>
    %80 = arith.addf %77, %79 : vector<8x128xf32>
    %81 = vector.shape_cast %80 : vector<8x128xf32> to vector<1x8x128xf32>
    %c0_38 = arith.constant 0 : index
    %c0_39 = arith.constant 0 : index
    %c0_40 = arith.constant 0 : index
    %82 = vector.load %arg8[%c0_38, %c0_39, %c0_40] : memref<1x8x128xf32, #tpu.memory_space<vmem>>, vector<1x8x128xf32>
    tpu.vector_store %arg8[%c0_38, %c0_39, %c0_40], %81 {strides = array<i32>} : memref<1x8x128xf32, #tpu.memory_space<vmem>>, vector<1x8x128xf32>,
    return
  }
  func.func @transform_0(%arg0: i32, %arg1: i32) -> (i32, i32, i32) {
    %c0_i32 = arith.constant 0 : i32
    %c0_i32_0 = arith.constant 0 : i32
    return %arg0, %arg1, %c0_i32 : i32, i32, i32
  }
  func.func @transform_1(%arg0: i32, %arg1: i32) -> (i32, i32, i32, i32) {
    %c0_i32 = arith.constant 0 : i32
    %c0_i32_0 = arith.constant 0 : i32
    %c0_i32_1 = arith.constant 0 : i32
    return %arg0, %arg1, %c0_i32, %c0_i32_0 : i32, i32, i32, i32
  }
  func.func @transform_2(%arg0: i32, %arg1: i32) -> (i32, i32) {
    %c0_i32 = arith.constant 0 : i32
    %c0_i32_0 = arith.constant 0 : i32
    %c0_i32_1 = arith.constant 0 : i32
    return %c0_i32, %c0_i32_0 : i32, i32
  }
  func.func @transform_3(%arg0: i32, %arg1: i32) -> (i32, i32) {
    %c0_i32 = arith.constant 0 : i32
    %c0_i32_0 = arith.constant 0 : i32
    %c0_i32_1 = arith.constant 0 : i32
    return %c0_i32, %c0_i32_0 : i32, i32
  }
  func.func @transform_4(%arg0: i32, %arg1: i32) -> (i32, i32) {
    %c0_i32 = arith.constant 0 : i32
    %c0_i32_0 = arith.constant 0 : i32
    %c0_i32_1 = arith.constant 0 : i32
    return %c0_i32, %c0_i32_0 : i32, i32
  }
  func.func @transform_5(%arg0: i32, %arg1: i32) -> (i32, i32) {
    %c0_i32 = arith.constant 0 : i32
    %c0_i32_0 = arith.constant 0 : i32
    %c0_i32_1 = arith.constant 0 : i32
    return %c0_i32, %c0_i32_0 : i32, i32
  }
  func.func @transform_6(%arg0: i32, %arg1: i32) -> (i32, i32, i32) {
    %c0_i32 = arith.constant 0 : i32
    %c0_i32_0 = arith.constant 0 : i32
    return %arg0, %arg1, %c0_i32 : i32, i32, i32
  }
}

</mosaic_0001>

<llo_original>
// kernel: tpu_custom_call.1
$region0: #{tpu_custom_call.1}
  #allocation0 [shape = 'u32[]', space=smem, size = 0x4, offset = 0x4, fixed_abs, tag = 'smem constant byte address 0x4 - core index']
  #allocation1 [shape = 'u32[72,128]{1,0:T(1,128)}', space=vmem, size = 0x9000, scoped, tag = 'internal scratch']
  #allocation2 [shape = 'f32[24,128]{1,0:T(8,128)}', space=vmem, size = 0x3000, scoped, tag = 'scratch operand']
  %s0 = inlined_call_operand.hbm [shape: f32[2,24,128], index: 0, kind: input, shape index: {}]
  %s1 = inlined_call_operand.hbm [shape: f32[2,3,16,128], index: 1, kind: input, shape index: {}]
  %s2 = inlined_call_operand.vmem [shape: f32[1,128], index: 2, kind: input, shape index: {}]
  %s3 = inlined_call_operand.vmem [shape: f32[1,128], index: 3, kind: input, shape index: {}]
  %s4 = inlined_call_operand.hbm [shape: f32[640,128], index: 4, kind: input, shape index: {}]
  %s5 = inlined_call_operand.vmem [shape: f32[1,128], index: 5, kind: input, shape index: {}]
  %s6 = inlined_call_operand.hbm [shape: f32[2,24,128], index: 6, kind: output, shape index: {}]
  %s7 = sld [smem:[#allocation0]]
  $region77: #{tpu_custom_call.1} parent=0
    _
  %s9 = ssub.s32 1, %s7
  %s10 = scalar_select 0, %s9, %s7
  $region1: #{tpu_custom_call.1} parent=0
    #allocation3 [shape = 'u8[8192]{0}', space=vmem, size = 0x2000, scoped, tag = 'input window, operand 0']
    #allocation4 [shape = 's32[2]{0}', space=sflag, size = 0x8, scoped, tag = 'scoped memory for tpu_custom_call.1']
    #allocation5 [shape = 's32[2]{0}', space=sflag, size = 0x8, scoped, tag = 'scoped memory for tpu_custom_call.1']
    #allocation6 [shape = 'u8[16384]{0}', space=vmem, size = 0x4000, scoped, tag = 'input window, operand 1']
    #allocation7 [shape = 's32[2]{0}', space=sflag, size = 0x8, scoped, tag = 'scoped memory for tpu_custom_call.1']
    #allocation8 [shape = 'u8[327680]{0}', space=vmem, size = 0x50000, scoped, tag = 'input window, operand 4, single buffered']
    #allocation9 [shape = 'u8[8192]{0}', space=vmem, size = 0x2000, scoped, tag = 'output window, operand 0']
    %11 = vsyncpa [#allocation4], 0
    %s12 = scalar_lea.sflag [#allocation4], 1
    %13 = vsyncpa %s12, 0
    %14 = vsyncpa [#allocation7], 0
    %s15 = scalar_lea.sflag [#allocation7], 1
    %16 = vsyncpa %s15, 0
    %17 = vsyncpa [#allocation5], 0
    %s18 = scalar_lea.sflag [#allocation5], 1
    %19 = vsyncpa %s18, 0
    loop: start=0, step=1, limit=8
    $region2: #{tpu_custom_call.1} parent=1 // loop_pre_header
      _
    $region3: #{tpu_custom_call.1} parent=1 // loop_header
      %s21 = sphi 0, %s25
      %p22 = scmp.ge.s32.totalorder %s21, 8
      %s28 = sphi 0, %s40
      %s29 = sphi 0, %s36
      %s30 = sphi 0, %s28
      %s31 = sphi 0, %s29
      %s32 = sphi 0, %s30
      %s33 = sphi 0, %s31
      %s45 = sphi 0, %s47
      %s48 = sphi 0, %s45
      %s49 = sphi 0, %s48
      %s65 = sphi 0, %s49
      %s73 = sphi 0, %s75
      %s76 = sphi 0, %s73
      %s77 = sphi 0, %s76
      %s93 = sphi 0, %s77
      %s97 = sphi 0, %s97
      %s99 = sphi 0, %s97
      %s100 = sphi 0, %s99
      %s114 = sphi 0, %s100
      %s118 = sphi 0, %s118
      %s120 = sphi 0, %s118
      %s121 = sphi 0, %s120
      %s135 = sphi 0, %s121
      %s139 = sphi 0, %s139
      %s141 = sphi 0, %s139
      %s142 = sphi 0, %s141
      %s156 = sphi 0, %s142
      %s160 = sphi 0, %s160
      %s162 = sphi 0, %s160
      %s163 = sphi 0, %s162
      %s177 = sphi 0, %s163
      %s185 = sphi 0, %s187
      %s188 = sphi 0, %s185
      %s189 = sphi 0, %s188
      %s205 = sphi 0, %s189
    $region4: #{tpu_custom_call.1} parent=1 // loop_header_branch
      %24 = sbr.rel (%p22) target = $region8
    $region5: #{tpu_custom_call.1} parent=1 // loop_body
      %s26 = ssub.s32 %s21, 1
      %s27 = ssub.s32 %s21, 2
      %s34 = sadd.s32 1, %s29
      %p35 = scmp.ge.s32.totalorder %s34, 3
      %s36 = scalar_select %p35, 0, %s34
      %s37 = sadd.s32 1, %s28
      %s38 = scalar_select %p35, %s37, %s28
      %p39 = scmp.ge.s32.totalorder %s38, 2
      %s40 = scalar_select %p39, 0, %s38
      %s41 = ssub.s32 %s28, %s40
      %s42 = ssub.s32 %s29, %s36
      %s43 = sor.u32 %s41, %s42
      %p44 = scmp.eq.s32.totalorder %s43, 0
      %s46 = sadd.s32 %s45, 1
      %s47 = scalar_select %p44, %s45, %s46
      %p50 = pneg %p44
      %p51 = scmp.eq.s32.totalorder %s21, 5
      %p52 = por %p50, %p51
      %p53 = scmp.ne.s32.totalorder %s45, %s48
      %p54 = scmp.eq.s32.totalorder %s21, 0
      %p55 = por %p53, %p54
      %p56 = scmp.ne.s32.totalorder %s45, %s48
      %p57 = scmp.eq.s32.totalorder %s26, 5
      %p58 = por %p56, %p57
      %p59 = scmp.ne.s32.totalorder %s48, %s49
      %p60 = scmp.eq.s32.totalorder %s26, 0
      %p61 = por %p59, %p60
      %p62 = scmp.ne.s32.totalorder %s48, %s49
      %p63 = scmp.eq.s32.totalorder %s27, 5
      %p64 = por %p62, %p63
      %p66 = scmp.ne.s32.totalorder %s49, %s65
      %p67 = scmp.eq.s32.totalorder %s27, 0
      %p68 = por %p66, %p67
      %s69 = ssub.s32 %s28, %s40
      %s70 = ssub.s32 %s29, %s36
      %s71 = sor.u32 %s69, %s70
      %p72 = scmp.eq.s32.totalorder %s71, 0
      %s74 = sadd.s32 %s73, 1
      %s75 = scalar_select %p72, %s73, %s74
      %p78 = pneg %p72
      %p79 = scmp.eq.s32.totalorder %s21, 5
      %p80 = por %p78, %p79
      %p81 = scmp.ne.s32.totalorder %s73, %s76
      %p82 = scmp.eq.s32.totalorder %s21, 0
      %p83 = por %p81, %p82
      %p84 = scmp.ne.s32.totalorder %s73, %s76
      %p85 = scmp.eq.s32.totalorder %s26, 5
      %p86 = por %p84, %p85
      %p87 = scmp.ne.s32.totalorder %s76, %s77
      %p88 = scmp.eq.s32.totalorder %s26, 0
      %p89 = por %p87, %p88
      %p90 = scmp.ne.s32.totalorder %s76, %s77
      %p91 = scmp.eq.s32.totalorder %s27, 5
      %p92 = por %p90, %p91
      %p94 = scmp.ne.s32.totalorder %s77, %s93
      %p95 = scmp.eq.s32.totalorder %s27, 0
      %p96 = por %p94, %p95
      %s98 = sadd.s32 %s97, 1
      %p101 = scmp.eq.s32.totalorder %s21, 5
      %p102 = scmp.ne.s32.totalorder %s97, %s99
      %p103 = scmp.eq.s32.totalorder %s21, 0
      %p104 = por %p102, %p103
      %p105 = scmp.ne.s32.totalorder %s97, %s99
      %p106 = scmp.eq.s32.totalorder %s26, 5
      %p107 = por %p105, %p106
      %p108 = scmp.ne.s32.totalorder %s99, %s100
      %p109 = scmp.eq.s32.totalorder %s26, 0
      %p110 = por %p108, %p109
      %p111 = scmp.ne.s32.totalorder %s99, %s100
      %p112 = scmp.eq.s32.totalorder %s27, 5
      %p113 = por %p111, %p112
      %p115 = scmp.ne.s32.totalorder %s100, %s114
      %p116 = scmp.eq.s32.totalorder %s27, 0
      %p117 = por %p115, %p116
      %s119 = sadd.s32 %s118, 1
      %p122 = scmp.eq.s32.totalorder %s21, 5
      %p123 = scmp.ne.s32.totalorder %s118, %s120
      %p124 = scmp.eq.s32.totalorder %s21, 0
      %p125 = por %p123, %p124
      %p126 = scmp.ne.s32.totalorder %s118, %s120
      %p127 = scmp.eq.s32.totalorder %s26, 5
      %p128 = por %p126, %p127
      %p129 = scmp.ne.s32.totalorder %s120, %s121
      %p130 = scmp.eq.s32.totalorder %s26, 0
      %p131 = por %p129, %p130
      %p132 = scmp.ne.s32.totalorder %s120, %s121
      %p133 = scmp.eq.s32.totalorder %s27, 5
      %p134 = por %p132, %p133
      %p136 = scmp.ne.s32.totalorder %s121, %s135
      %p137 = scmp.eq.s32.totalorder %s27, 0
      %p138 = por %p136, %p137
      %s140 = sadd.s32 %s139, 1
      %p143 = scmp.eq.s32.totalorder %s21, 5
      %p144 = scmp.ne.s32.totalorder %s139, %s141
      %p145 = scmp.eq.s32.totalorder %s21, 0
      %p146 = por %p144, %p145
      %p147 = scmp.ne.s32.totalorder %s139, %s141
      %p148 = scmp.eq.s32.totalorder %s26, 5
      %p149 = por %p147, %p148
      %p150 = scmp.ne.s32.totalorder %s141, %s142
      %p151 = scmp.eq.s32.totalorder %s26, 0
      %p152 = por %p150, %p151
      %p153 = scmp.ne.s32.totalorder %s141, %s142
      %p154 = scmp.eq.s32.totalorder %s27, 5
      %p155 = por %p153, %p154
      %p157 = scmp.ne.s32.totalorder %s142, %s156
      %p158 = scmp.eq.s32.totalorder %s27, 0
      %p159 = por %p157, %p158
      %s161 = sadd.s32 %s160, 1
      %p164 = scmp.eq.s32.totalorder %s21, 5
      %p165 = scmp.ne.s32.totalorder %s160, %s162
      %p166 = scmp.eq.s32.totalorder %s21, 0
      %p167 = por %p165, %p166
      %p168 = scmp.ne.s32.totalorder %s160, %s162
      %p169 = scmp.eq.s32.totalorder %s26, 5
      %p170 = por %p168, %p169
      %p171 = scmp.ne.s32.totalorder %s162, %s163
      %p172 = scmp.eq.s32.totalorder %s26, 0
      %p173 = por %p171, %p172
      %p174 = scmp.ne.s32.totalorder %s162, %s163
      %p175 = scmp.eq.s32.totalorder %s27, 5
      %p176 = por %p174, %p175
      %p178 = scmp.ne.s32.totalorder %s163, %s177
      %p179 = scmp.eq.s32.totalorder %s27, 0
      %p180 = por %p178, %p179
      %s181 = ssub.s32 %s28, %s40
      %s182 = ssub.s32 %s29, %s36
      %s183 = sor.u32 %s181, %s182
      %p184 = scmp.eq.s32.totalorder %s183, 0
      %s186 = sadd.s32 %s185, 1
      %s187 = scalar_select %p184, %s185, %s186
      %p190 = pneg %p184
      %p191 = scmp.eq.s32.totalorder %s21, 5
      %p192 = por %p190, %p191
      %p193 = scmp.ne.s32.totalorder %s185, %s188
      %p194 = scmp.eq.s32.totalorder %s21, 0
      %p195 = por %p193, %p194
      %p196 = scmp.ne.s32.totalorder %s185, %s188
      %p197 = scmp.eq.s32.totalorder %s26, 5
      %p198 = por %p196, %p197
      %p199 = scmp.ne.s32.totalorder %s188, %s189
      %p200 = scmp.eq.s32.totalorder %s26, 0
      %p201 = por %p199, %p200
      %p202 = scmp.ne.s32.totalorder %s188, %s189
      %p203 = scmp.eq.s32.totalorder %s27, 5
      %p204 = por %p202, %p203
      %p206 = scmp.ne.s32.totalorder %s189, %s205
      %p207 = scmp.eq.s32.totalorder %s27, 0
      %p208 = por %p206, %p207
      %p209 = scmp.le.s32.totalorder 1, %s21
      %p210 = scmp.lt.s32.totalorder %s21, 7
      %p211 = pnand %p209, %p210
      %p212 = pneg %p211
      // Predicated region
      $region9: #{tpu_custom_call.1} parent=5 // pred_check
        _
      $region10: #{tpu_custom_call.1} parent=5 // pred_check_branch
        %214 = sbr.rel (%p211) target = $region12
      $region11: #{tpu_custom_call.1} parent=5 // pred_region
        %s215 = ssub.s32 %s21, 1
        // Predicated region
        $region13: #{tpu_custom_call.1} parent=11 // pred_check
          %p216 = pneg %p110
        $region14: #{tpu_custom_call.1} parent=11 // pred_check_branch
          %218 = sbr.rel (%p216) target = $region16
        $region15: #{tpu_custom_call.1} parent=11 // pred_region
          _
        $region16: #{tpu_custom_call.1} parent=11 // pred_fallthru
          _
        // Predicated region
        $region17: #{tpu_custom_call.1} parent=11 // pred_check
          %p219 = pneg %p131
        $region18: #{tpu_custom_call.1} parent=11 // pred_check_branch
          %221 = sbr.rel (%p219) target = $region20
        $region19: #{tpu_custom_call.1} parent=11 // pred_region
          _
        $region20: #{tpu_custom_call.1} parent=11 // pred_fallthru
          _
        // Predicated region
        $region21: #{tpu_custom_call.1} parent=11 // pred_check
          %p222 = pneg %p152
        $region22: #{tpu_custom_call.1} parent=11 // pred_check_branch
          %224 = sbr.rel (%p222) target = $region24
        $region23: #{tpu_custom_call.1} parent=11 // pred_region
          %226 = vsyncadd [#allocation7], 0
          %s227 = sshll.u32 %s4, 4
          %s228 = int_to_ptr.hbm [resolvable:$true] %s227
          %s229 = sshll.u32 [#allocation8], 4
          %s230 = int_to_ptr.vmem [resolvable:$true] %s229
          %235 = dma.hbm_to_vmem [thread:$0]  %s228, 10240, %s230, [#allocation7], 128, 128, 8
        $region24: #{tpu_custom_call.1} parent=11 // pred_fallthru
          _
        // Predicated region
        $region25: #{tpu_custom_call.1} parent=11 // pred_check
          %p236 = pneg %p173
        $region26: #{tpu_custom_call.1} parent=11 // pred_check_branch
          %238 = sbr.rel (%p236) target = $region28
        $region27: #{tpu_custom_call.1} parent=11 // pred_region
          _
        $region28: #{tpu_custom_call.1} parent=11 // pred_fallthru
          _
      $region12: #{tpu_custom_call.1} parent=5 // pred_fallthru
        _
      %p239 = scmp.lt.s32.totalorder %s21, 6
      // Predicated region
      $region29: #{tpu_custom_call.1} parent=5 // pred_check
        %p240 = pneg %p239
      $region30: #{tpu_custom_call.1} parent=5 // pred_check_branch
        %242 = sbr.rel (%p240) target = $region32
      $region31: #{tpu_custom_call.1} parent=5 // pred_region
        // Predicated region
        $region33: #{tpu_custom_call.1} parent=31 // pred_check
          %p243 = pneg %p55
        $region34: #{tpu_custom_call.1} parent=31 // pred_check_branch
          %245 = sbr.rel (%p243) target = $region36
        $region35: #{tpu_custom_call.1} parent=31 // pred_region
          %s246 = sand.u32 %s45, 1
          %s247 = scalar_lea.sflag [#allocation4], %s246
          %s248 = sand.u32 %s45, 1
          %s249 = smul.addr %s248, 8
          %s250 = scalar_lea.vmem [#allocation3], %s249
          %252 = vsyncadd %s247, 0
          %s253 = smul.addr %s28, 3
          %s254 = sadd.s32 %s29, %s253
          %s255 = smul.addr %s254, 8
          %s256 = scalar_lea.hbm %s0, %s255
          %s258 = sshll.u32 %s256, 4
          %s259 = int_to_ptr.hbm [resolvable:$true] %s258
          %s260 = sshll.u32 %s250, 4
          %s261 = int_to_ptr.vmem [resolvable:$true] %s260
          %263 = dma.hbm_to_vmem [thread:$0]  %s259, 128, %s261, %s247
        $region36: #{tpu_custom_call.1} parent=31 // pred_fallthru
          _
        // Predicated region
        $region37: #{tpu_custom_call.1} parent=31 // pred_check
          %p264 = pneg %p83
        $region38: #{tpu_custom_call.1} parent=31 // pred_check_branch
          %266 = sbr.rel (%p264) target = $region40
        $region39: #{tpu_custom_call.1} parent=31 // pred_region
          %s267 = sand.u32 %s21, 1
          %s268 = scalar_lea.sflag [#allocation7], %s267
          %s269 = sand.u32 %s73, 1
          %s270 = smul.addr %s269, 16
          %s271 = scalar_lea.vmem [#allocation6], %s270
          %273 = vsyncadd %s268, 0
          %s274 = smul.addr %s29, 2
          %s275 = smul.addr %s28, 6
          %s276 = sadd.s32 %s274, %s275
          %s277 = smul.addr %s276, 8
          %s278 = scalar_lea.hbm %s1, %s277
          %s279 = sshll.u32 %s278, 4
          %s280 = int_to_ptr.hbm [resolvable:$true] %s279
          %s281 = sshll.u32 %s271, 4
          %s282 = int_to_ptr.vmem [resolvable:$true] %s281
          %287 = dma.hbm_to_vmem [thread:$0]  %s280, 256, %s282, %s268, 128, 128, 8
        $region40: #{tpu_custom_call.1} parent=31 // pred_fallthru
          _
      $region32: #{tpu_custom_call.1} parent=5 // pred_fallthru
        _
      %p288 = scmp.le.s32.totalorder 1, %s21
      %p289 = scmp.lt.s32.totalorder %s21, 7
      %p290 = pnand %p288, %p289
      %p291 = pneg %p290
      // Predicated region
      $region41: #{tpu_custom_call.1} parent=5 // pred_check
        _
      $region42: #{tpu_custom_call.1} parent=5 // pred_check_branch
        %293 = sbr.rel (%p290) target = $region44
      $region43: #{tpu_custom_call.1} parent=5 // pred_region
        %s294 = ssub.s32 %s21, 1
        %s295 = sand.u32 %s48, 1
        %s296 = scalar_lea.sflag [#allocation4], %s295
        %s297 = sand.u32 %s48, 1
        %s298 = smul.addr %s297, 8
        %s299 = scalar_lea.vmem [#allocation3], %s298
        // Predicated region
        $region45: #{tpu_custom_call.1} parent=43 // pred_check
          %p300 = pneg %p61
        $region46: #{tpu_custom_call.1} parent=43 // pred_check_branch
          %302 = sbr.rel (%p300) target = $region48
        $region47: #{tpu_custom_call.1} parent=43 // pred_region
          %304 = dma.done %s296, 128
        $region48: #{tpu_custom_call.1} parent=43 // pred_fallthru
          _
        %s305 = sand.u32 %s26, 1
        %s306 = scalar_lea.sflag [#allocation7], %s305
        %s307 = sand.u32 %s76, 1
        %s308 = smul.addr %s307, 16
        %s309 = scalar_lea.vmem [#allocation6], %s308
        // Predicated region
        $region49: #{tpu_custom_call.1} parent=43 // pred_check
          %p310 = pneg %p89
        $region50: #{tpu_custom_call.1} parent=43 // pred_check_branch
          %312 = sbr.rel (%p310) target = $region52
        $region51: #{tpu_custom_call.1} parent=43 // pred_region
          %314 = dma.done %s306, 256
        $region52: #{tpu_custom_call.1} parent=43 // pred_fallthru
          _
        // Predicated region
        $region53: #{tpu_custom_call.1} parent=43 // pred_check
          %p315 = pneg %p152
        $region54: #{tpu_custom_call.1} parent=43 // pred_check_branch
          %317 = sbr.rel (%p315) target = $region56
        $region55: #{tpu_custom_call.1} parent=43 // pred_region
          %319 = dma.done [#allocation7], 10240
        $region56: #{tpu_custom_call.1} parent=43 // pred_fallthru
          _
        %s320 = sand.u32 %s48, 1
        %s321 = scalar_lea.sflag [#allocation4], %s320
        %s322 = sand.u32 %s48, 1
        %s323 = smul.addr %s322, 8
        %s324 = scalar_lea.vmem [#allocation3], %s323
        %p325 = pneg %p61
        %p326 = pneg %p58
        %s327 = sand.u32 %s26, 1
        %s328 = scalar_lea.sflag [#allocation7], %s327
        %s329 = sand.u32 %s76, 1
        %s330 = smul.addr %s329, 16
        %s331 = scalar_lea.vmem [#allocation6], %s330
        %p332 = pneg %p89
        %p333 = pneg %p86
        %p334 = pneg %p110
        %p335 = pneg %p107
        %p336 = pneg %p131
        %p337 = pneg %p128
        %p338 = pneg %p152
        %p339 = pneg %p149
        %p340 = pneg %p173
        %p341 = pneg %p170
        %p342 = pneg %p201
        %p343 = pneg %p198
        %s344 = sand.u32 %s188, 1
        %s345 = scalar_lea.sflag [#allocation5], %s344
        %s346 = sand.u32 %s188, 1
        %s347 = smul.addr %s346, 8
        %s348 = scalar_lea.vmem [#allocation9], %s347
        %v349 = vld [vmem:[%s2] sm:$0x1]
        %v350 = vld [vmem:[%s3] sm:$0x1]
        %v351 = vld [vmem:[%s299] sm:$0xff]
        %v353 = vperm.slane %v349, 0
        %v355 = vmul.f32 %v351, %v353
        %v357 = vperm.slane %v350, 0
        %v359 = vadd.f32 %v355, %v357
        %v360 = vmul.f32 %v359, 0.5
        %v361 = vmul.f32 %v359, 0.044715
        %v362 = vmul.f32 %v361, %v359
        %v363 = vmul.f32 %v362, %v359
        %v364 = vadd.f32 %v359, %v363
        %v365 = vmul.f32 %v364, 0.7978846
        %v366 = vtanh.pop %v365
        %v367 = vadd.f32 %v366, 1.0
        %v368 = vmul.f32 %v360, %v367
        %p369 = scmp.eq.s32.totalorder %s31, 2
        // Predicated region
        $region57: #{tpu_custom_call.1} parent=43 // pred_check
          %p370 = pneg %p369
        $region58: #{tpu_custom_call.1} parent=43 // pred_check_branch
          %372 = sbr.rel (%p370) target = $region60
        $region59: #{tpu_custom_call.1} parent=43 // pred_region
          %v373 = vlaneseq
          %v374 = vshrl.u32 %v373, 7
          %s375 = smul.u32 %s31, 8
          %v376 = vstv %s375
          %v377 = vadd.s32 %v374, %v376
          %vm378 = vcmp.lt.s32.totalorder %v377, 20
          %v379 = vsel %vm378, 1, 0
          %vm380 = vcmp.eq.s32.totalorder %v379, 1
          %v381 = vsel %vm380, %v368, 0.0
          %382 = vst [vmem:[#allocation2 + $0x8] sm:$0xff] %v381
        $region60: #{tpu_custom_call.1} parent=43 // pred_fallthru
          _
        %p383 = scmp.ne.s32.totalorder %s31, 2
        // Predicated region
        $region61: #{tpu_custom_call.1} parent=43 // pred_check
          %p384 = pneg %p383
        $region62: #{tpu_custom_call.1} parent=43 // pred_check_branch
          %386 = sbr.rel (%p384) target = $region64
        $region63: #{tpu_custom_call.1} parent=43 // pred_region
          %387 = vst [vmem:[#allocation2 + $0x8] sm:$0xff] %v368
        $region64: #{tpu_custom_call.1} parent=43 // pred_fallthru
          _
        %v388 = vld [vmem:[%s309] sm:$0xff]
        %v389 = vld [vmem:[%s309 + $0x8] sm:$0xff]
        %v390 = vmul.f32 %v388, %v353
        %v391 = vmul.f32 %v389, %v353
        %v392 = vadd.f32 %v390, %v357
        %v393 = vadd.f32 %v391, %v357
        %v394 = vmul.f32 %v392, 0.5
        %v395 = vmul.f32 %v393, 0.5
        %v396 = vmul.f32 %v392, 0.044715
        %v397 = vmul.f32 %v393, 0.044715
        %v398 = vmul.f32 %v396, %v392
        %v399 = vmul.f32 %v397, %v393
        %v400 = vmul.f32 %v398, %v392
        %v401 = vmul.f32 %v399, %v393
        %v402 = vadd.f32 %v392, %v400
        %v403 = vadd.f32 %v393, %v401
        %v404 = vmul.f32 %v402, 0.7978846
        %v405 = vmul.f32 %v403, 0.7978846
        %v406 = vtanh.pop %v404
        %v407 = vtanh.pop %v405
        %v408 = vadd.f32 %v406, 1.0
        %v409 = vadd.f32 %v407, 1.0
        %v410 = vmul.f32 %v394, %v408
        %v411 = vmul.f32 %v395, %v409
        %v412 = vlaneseq
        %v413 = vshrl.u32 %v412, 7
        %v414 = vadd.s32 %v413, 8
        %s415 = smul.u32 %s31, 8
        %s416 = ssub.s32 %s415, 8
        %v417 = vstv %s416
        %v418 = vadd.s32 %v417, %v413
        %v419 = vadd.s32 %v417, %v414
        %vm420 = vcmp.lt.s32.totalorder %v413, 8
        %vm421 = vcmp.lt.s32.totalorder %v414, 8
        %v422 = vsel %vm420, 0, 8
        %v423 = vsel %vm421, 0, 8
        %v424 = vadd.s32 %v418, %v422
        %v425 = vadd.s32 %v419, %v423
        %vm426 = vcmp.ge.s32.totalorder %v424, 0
        %vm427 = vcmp.ge.s32.totalorder %v425, 0
        %vm428 = vcmp.lt.s32.totalorder %v424, 20
        %vm429 = vcmp.lt.s32.totalorder %v425, 20
        %vm430 = vmand %vm426, %vm428
        %vm431 = vmand %vm427, %vm429
        %v432 = vsel %vm430, 1, 0
        %v433 = vsel %vm431, 1, 0
        %vm434 = vcmp.eq.s32.totalorder %v432, 1
        %vm435 = vcmp.eq.s32.totalorder %v433, 1
        %v436 = vsel %vm434, %v410, 0.0
        %v437 = vsel %vm435, %v411, 0.0
        %438 = vst [vmem:[#allocation2] sm:$0xff] %v436
        %439 = vst [vmem:[#allocation2 + $0x10] sm:$0xff] %v437
        %v440 = vld [vmem:[#allocation2 + $0x6] sm:$0xff]
        %v441 = vld [vmem:[#allocation2 + $0x7] sm:$0xff]
        %v442 = vld [vmem:[#allocation2 + $0x8] sm:$0xff]
        %v443 = vld [vmem:[#allocation2 + $0x9] sm:$0xff]
        %v444 = vld [vmem:[#allocation2 + $0xa] sm:$0xff]
        %v445 = vld [vmem:[#allocation8] sm:$0xff]
        %v446 = vld [vmem:[#allocation8 + $0x8] sm:$0xff]
        %v447 = vld [vmem:[#allocation8 + $0x10] sm:$0xff]
        %v448 = vld [vmem:[#allocation8 + $0x18] sm:$0xff]
        %v449 = vld [vmem:[#allocation8 + $0x20] sm:$0xff]
        %v450 = vld [vmem:[#allocation8 + $0x28] sm:$0xff]
        %v451 = vld [vmem:[#allocation8 + $0x30] sm:$0xff]
        %v452 = vld [vmem:[#allocation8 + $0x38] sm:$0xff]
        %v453 = vld [vmem:[#allocation8 + $0x40] sm:$0xff]
        %v454 = vld [vmem:[#allocation8 + $0x48] sm:$0xff]
        %v455 = vld [vmem:[#allocation8 + $0x50] sm:$0xff]
        %v456 = vld [vmem:[#allocation8 + $0x58] sm:$0xff]
        %v457 = vld [vmem:[#allocation8 + $0x60] sm:$0xff]
        %v458 = vld [vmem:[#allocation8 + $0x68] sm:$0xff]
        %v459 = vld [vmem:[#allocation8 + $0x70] sm:$0xff]
        %v460 = vld [vmem:[#allocation8 + $0x78] sm:$0xff]
        %v461 = vld [vmem:[#allocation8 + $0x80] sm:$0xff]
        %v462 = vld [vmem:[#allocation8 + $0x88] sm:$0xff]
        %v463 = vld [vmem:[#allocation8 + $0x90] sm:$0xff]
        %v464 = vld [vmem:[#allocation8 + $0x98] sm:$0xff]
        %v465 = vld [vmem:[#allocation8 + $0xa0] sm:$0xff]
        %v466 = vld [vmem:[#allocation8 + $0xa8] sm:$0xff]
        %v467 = vld [vmem:[#allocation8 + $0xb0] sm:$0xff]
        %v468 = vld [vmem:[#allocation8 + $0xb8] sm:$0xff]
        %v469 = vld [vmem:[#allocation8 + $0xc0] sm:$0xff]
        %v470 = vld [vmem:[#allocation8 + $0xc8] sm:$0xff]
        %v471 = vld [vmem:[#allocation8 + $0xd0] sm:$0xff]
        %v472 = vld [vmem:[#allocation8 + $0xd8] sm:$0xff]
        %v473 = vld [vmem:[#allocation8 + $0xe0] sm:$0xff]
        %v474 = vld [vmem:[#allocation8 + $0xe8] sm:$0xff]
        %v475 = vld [vmem:[#allocation8 + $0xf0] sm:$0xff]
        %v476 = vld [vmem:[#allocation8 + $0xf8] sm:$0xff]
        %v477 = vld [vmem:[#allocation8 + $0x100] sm:$0xff]
        %v478 = vld [vmem:[#allocation8 + $0x108] sm:$0xff]
        %v479 = vld [vmem:[#allocation8 + $0x110] sm:$0xff]
        %v480 = vld [vmem:[#allocation8 + $0x118] sm:$0xff]
        %v481 = vld [vmem:[#allocation8 + $0x120] sm:$0xff]
        %v482 = vld [vmem:[#allocation8 + $0x128] sm:$0xff]
        %v483 = vld [vmem:[#allocation8 + $0x130] sm:$0xff]
        %v484 = vld [vmem:[#allocation8 + $0x138] sm:$0xff]
        %v485 = vld [vmem:[#allocation8 + $0x140] sm:$0xff]
        %v486 = vld [vmem:[#allocation8 + $0x148] sm:$0xff]
        %v487 = vld [vmem:[#allocation8 + $0x150] sm:$0xff]
        %v488 = vld [vmem:[#allocation8 + $0x158] sm:$0xff]
        %v489 = vld [vmem:[#allocation8 + $0x160] sm:$0xff]
        %v490 = vld [vmem:[#allocation8 + $0x168] sm:$0xff]
        %v491 = vld [vmem:[#allocation8 + $0x170] sm:$0xff]
        %v492 = vld [vmem:[#allocation8 + $0x178] sm:$0xff]
        %v493 = vld [vmem:[#allocation8 + $0x180] sm:$0xff]
        %v494 = vld [vmem:[#allocation8 + $0x188] sm:$0xff]
        %v495 = vld [vmem:[#allocation8 + $0x190] sm:$0xff]
        %v496 = vld [vmem:[#allocation8 + $0x198] sm:$0xff]
        %v497 = vld [vmem:[#allocation8 + $0x1a0] sm:$0xff]
        %v498 = vld [vmem:[#allocation8 + $0x1a8] sm:$0xff]
        %v499 = vld [vmem:[#allocation8 + $0x1b0] sm:$0xff]
        %v500 = vld [vmem:[#allocation8 + $0x1b8] sm:$0xff]
        %v501 = vld [vmem:[#allocation8 + $0x1c0] sm:$0xff]
        %v502 = vld [vmem:[#allocation8 + $0x1c8] sm:$0xff]
        %v503 = vld [vmem:[#allocation8 + $0x1d0] sm:$0xff]
        %v504 = vld [vmem:[#allocation8 + $0x1d8] sm:$0xff]
        %v505 = vld [vmem:[#allocation8 + $0x1e0] sm:$0xff]
        %v506 = vld [vmem:[#allocation8 + $0x1e8] sm:$0xff]
        %v507 = vld [vmem:[#allocation8 + $0x1f0] sm:$0xff]
        %v508 = vld [vmem:[#allocation8 + $0x1f8] sm:$0xff]
        %v509 = vld [vmem:[#allocation8 + $0x200] sm:$0xff]
        %v510 = vld [vmem:[#allocation8 + $0x208] sm:$0xff]
        %v511 = vld [vmem:[#allocation8 + $0x210] sm:$0xff]
        %v512 = vld [vmem:[#allocation8 + $0x218] sm:$0xff]
        %v513 = vld [vmem:[#allocation8 + $0x220] sm:$0xff]
        %v514 = vld [vmem:[#allocation8 + $0x228] sm:$0xff]
        %v515 = vld [vmem:[#allocation8 + $0x230] sm:$0xff]
        %v516 = vld [vmem:[#allocation8 + $0x238] sm:$0xff]
        %v517 = vld [vmem:[#allocation8 + $0x240] sm:$0xff]
        %v518 = vld [vmem:[#allocation8 + $0x248] sm:$0xff]
        %v519 = vld [vmem:[#allocation8 + $0x250] sm:$0xff]
        %v520 = vld [vmem:[#allocation8 + $0x258] sm:$0xff]
        %v521 = vld [vmem:[#allocation8 + $0x260] sm:$0xff]
        %v522 = vld [vmem:[#allocation8 + $0x268] sm:$0xff]
        %v523 = vld [vmem:[#allocation8 + $0x270] sm:$0xff]
        %v524 = vld [vmem:[#allocation8 + $0x278] sm:$0xff]
        %v525 = vld [vmem:[%s5] sm:$0x1]
        %v527 = vperm.slane %v525, 0
        %529 = vmatpush.msra.mxu0 %v460
        %530 = vmatpush.msra.mxu0 %v459
        %531 = vmatpush.msra.mxu0 %v458
        %532 = vmatpush.msra.mxu0 %v457
        %533 = vmatpush.msra.mxu0 %v456
        %534 = vmatpush.msra.mxu0 %v455
        %535 = vmatpush.msra.mxu0 %v454
        %536 = vmatpush.msra.mxu0 %v453
        %537 = vmatpush.msra.mxu0 %v452
        %538 = vmatpush.msra.mxu0 %v451
        %539 = vmatpush.msra.mxu0 %v450
        %540 = vmatpush.msra.mxu0 %v449
        %541 = vmatpush.msra.mxu0 %v448
        %542 = vmatpush.msra.mxu0 %v447
        %543 = vmatpush.msra.mxu0 %v446
        %544 = vmatpush.msra.mxu0 %v445
        %545 = vmatmul.f32.gmra.mxu0 %v440
        %v546 = vpop.f32.mrf.mxu0
        %v547 = vadd.f32 %v527, %v546
        %548 = vdwg.mxu0
        %549 = vmatpush.msra.mxu0 %v476
        %550 = vmatpush.msra.mxu0 %v475
        %551 = vmatpush.msra.mxu0 %v474
        %552 = vmatpush.msra.mxu0 %v473
        %553 = vmatpush.msra.mxu0 %v472
        %554 = vmatpush.msra.mxu0 %v471
        %555 = vmatpush.msra.mxu0 %v470
        %556 = vmatpush.msra.mxu0 %v469
        %557 = vmatpush.msra.mxu0 %v468
        %558 = vmatpush.msra.mxu0 %v467
        %559 = vmatpush.msra.mxu0 %v466
        %560 = vmatpush.msra.mxu0 %v465
        %561 = vmatpush.msra.mxu0 %v464
        %562 = vmatpush.msra.mxu0 %v463
        %563 = vmatpush.msra.mxu0 %v462
        %564 = vmatpush.msra.mxu0 %v461
        %565 = vmatmul.f32.gmra.mxu0 %v441
        %v566 = vpop.f32.mrf.mxu0
        %v567 = vadd.f32 %v547, %v566
        %568 = vdwg.mxu0
        %569 = vmatpush.msra.mxu0 %v492
        %570 = vmatpush.msra.mxu0 %v491
        %571 = vmatpush.msra.mxu0 %v490
        %572 = vmatpush.msra.mxu0 %v489
        %573 = vmatpush.msra.mxu0 %v488
        %574 = vmatpush.msra.mxu0 %v487
        %575 = vmatpush.msra.mxu0 %v486
        %576 = vmatpush.msra.mxu0 %v485
        %577 = vmatpush.msra.mxu0 %v484
        %578 = vmatpush.msra.mxu0 %v483
        %579 = vmatpush.msra.mxu0 %v482
        %580 = vmatpush.msra.mxu0 %v481
        %581 = vmatpush.msra.mxu0 %v480
        %582 = vmatpush.msra.mxu0 %v479
        %583 = vmatpush.msra.mxu0 %v478
        %584 = vmatpush.msra.mxu0 %v477
        %585 = vmatmul.f32.gmra.mxu0 %v442
        %v586 = vpop.f32.mrf.mxu0
        %v587 = vadd.f32 %v567, %v586
        %588 = vdwg.mxu0
        %589 = vmatpush.msra.mxu0 %v508
        %590 = vmatpush.msra.mxu0 %v507
        %591 = vmatpush.msra.mxu0 %v506
        %592 = vmatpush.msra.mxu0 %v505
        %593 = vmatpush.msra.mxu0 %v504
        %594 = vmatpush.msra.mxu0 %v503
        %595 = vmatpush.msra.mxu0 %v502
        %596 = vmatpush.msra.mxu0 %v501
        %597 = vmatpush.msra.mxu0 %v500
        %598 = vmatpush.msra.mxu0 %v499
        %599 = vmatpush.msra.mxu0 %v498
        %600 = vmatpush.msra.mxu0 %v497
        %601 = vmatpush.msra.mxu0 %v496
        %602 = vmatpush.msra.mxu0 %v495
        %603 = vmatpush.msra.mxu0 %v494
        %604 = vmatpush.msra.mxu0 %v493
        %605 = vmatmul.f32.gmra.mxu0 %v443
        %v606 = vpop.f32.mrf.mxu0
        %v607 = vadd.f32 %v587, %v606
        %608 = vdwg.mxu0
        %609 = vmatpush.msra.mxu0 %v524
        %610 = vmatpush.msra.mxu0 %v523
        %611 = vmatpush.msra.mxu0 %v522
        %612 = vmatpush.msra.mxu0 %v521
        %613 = vmatpush.msra.mxu0 %v520
        %614 = vmatpush.msra.mxu0 %v519
        %615 = vmatpush.msra.mxu0 %v518
        %616 = vmatpush.msra.mxu0 %v517
        %617 = vmatpush.msra.mxu0 %v516
        %618 = vmatpush.msra.mxu0 %v515
        %619 = vmatpush.msra.mxu0 %v514
        %620 = vmatpush.msra.mxu0 %v513
        %621 = vmatpush.msra.mxu0 %v512
        %622 = vmatpush.msra.mxu0 %v511
        %623 = vmatpush.msra.mxu0 %v510
        %624 = vmatpush.msra.mxu0 %v509
        %625 = vmatmul.f32.gmra.mxu0 %v444
        %v626 = vpop.f32.mrf.mxu0
        %v627 = vadd.f32 %v607, %v626
        %628 = vdwg.mxu0
        %629 = vst [vmem:[%s348] sm:$0xff] %v627
        %s630 = sand.u32 %s188, 1
        %s631 = scalar_lea.sflag [#allocation5], %s630
        %s632 = sand.u32 %s188, 1
        %s633 = smul.addr %s632, 8
        %s634 = scalar_lea.vmem [#allocation9], %s633
        // Predicated region
        $region65: #{tpu_custom_call.1} parent=43 // pred_check
          %p635 = pneg %p198
        $region66: #{tpu_custom_call.1} parent=43 // pred_check_branch
          %637 = sbr.rel (%p635) target = $region68
        $region67: #{tpu_custom_call.1} parent=43 // pred_region
          %639 = vsyncadd %s631, 0
          %s640 = smul.addr %s30, 3
          %s641 = sadd.s32 %s31, %s640
          %s642 = smul.addr %s641, 8
          %s643 = scalar_lea.hbm %s6, %s642
          %s645 = sshll.u32 %s634, 4
          %s646 = int_to_ptr.vmem [resolvable:$true] %s645
          %s647 = sshll.u32 %s643, 4
          %s648 = int_to_ptr.hbm [resolvable:$true] %s647
          %650 = dma.vmem_to_hbm [thread:$0]  %s646, 128, %s648, %s631
        $region68: #{tpu_custom_call.1} parent=43 // pred_fallthru
          _
      $region44: #{tpu_custom_call.1} parent=5 // pred_fallthru
        _
      %p651 = scmp.le.s32.totalorder 2, %s21
      // Predicated region
      $region69: #{tpu_custom_call.1} parent=5 // pred_check
        %p652 = pneg %p651
      $region70: #{tpu_custom_call.1} parent=5 // pred_check_branch
        %654 = sbr.rel (%p652) target = $region72
      $region71: #{tpu_custom_call.1} parent=5 // pred_region
        %s655 = ssub.s32 %s21, 2
        // Predicated region
        $region73: #{tpu_custom_call.1} parent=71 // pred_check
          %p656 = pneg %p204
        $region74: #{tpu_custom_call.1} parent=71 // pred_check_branch
          %658 = sbr.rel (%p656) target = $region76
        $region75: #{tpu_custom_call.1} parent=71 // pred_region
          %s659 = sand.u32 %s189, 1
          %s660 = scalar_lea.sflag [#allocation5], %s659
          %s661 = sand.u32 %s189, 1
          %s662 = smul.addr %s661, 8
          %s663 = scalar_lea.vmem [#allocation9], %s662
          %665 = dma.done %s660, 128
        $region76: #{tpu_custom_call.1} parent=71 // pred_fallthru
          _
      $region72: #{tpu_custom_call.1} parent=5 // pred_fallthru
        _
    $region6: #{tpu_custom_call.1} parent=1 // loop_footer
      %s25 = sadd.s32 1, %s21
    $region7: #{tpu_custom_call.1} parent=1 // loop_footer_branch
      %20 = sbr.rel target = $region3
    $region8: #{tpu_custom_call.1} parent=1 // loop_exit
      _
    %666 = vsyncpa [#allocation4], 1
    %s667 = scalar_lea.sflag [#allocation4], 1
    %668 = vsyncpa %s667, 1
    %669 = vsyncpa [#allocation7], 1
    %s670 = scalar_lea.sflag [#allocation7], 1
    %671 = vsyncpa %s670, 1
    %672 = vsyncpa [#allocation5], 1
    %s673 = scalar_lea.sflag [#allocation5], 1
    %674 = vsyncpa %s673, 1

// kernel: tpu_custom_call.1
$region0: #{tpu_custom_call.1}
  #allocation0 [shape = 'u32[]', space=smem, size = 0x4, offset = 0x4, fixed_abs, tag = 'smem constant byte address 0x4 - core index']
  #allocation1 [shape = 'u32[72,128]{1,0:T(1,128)}', space=vmem, size = 0x9000, scoped, tag = 'internal scratch']
  #allocation2 [shape = 'f32[24,128]{1,0:T(8,128)}', space=vmem, size = 0x3000, scoped, tag = 'scratch operand']
  %s0 = inlined_call_operand.hbm [shape: f32[2,24,128], index: 0, kind: input, shape index: {}]
  %s1 = inlined_call_operand.hbm [shape: f32[2,3,16,128], index: 1, kind: input, shape index: {}]
  %s2 = inlined_call_operand.vmem [shape: f32[1,128], index: 2, kind: input, shape index: {}]
  %s3 = inlined_call_operand.vmem [shape: f32[1,128], index: 3, kind: input, shape index: {}]
  %s4 = inlined_call_operand.hbm [shape: f32[640,128], index: 4, kind: input, shape index: {}]
  %s5 = inlined_call_operand.vmem [shape: f32[1,128], index: 5, kind: input, shape index: {}]
  %s6 = inlined_call_operand.hbm [shape: f32[2,24,128], index: 6, kind: output, shape index: {}]
  %s7 = sld [smem:[#allocation0]]
  $region77: #{tpu_custom_call.1} parent=0
    _
  %s9 = ssub.s32 1, %s7
  %s10 = scalar_select 0, %s9, %s7
  $region1: #{tpu_custom_call.1} parent=0
    #allocation3 [shape = 'u8[8192]{0}', space=vmem, size = 0x2000, scoped, tag = 'input window, operand 0']
    #allocation4 [shape = 's32[2]{0}', space=sflag, size = 0x8, scoped, tag = 'scoped memory for tpu_custom_call.1']
    #allocation5 [shape = 's32[2]{0}', space=sflag, size = 0x8, scoped, tag = 'scoped memory for tpu_custom_call.1']
    #allocation6 [shape = 'u8[16384]{0}', space=vmem, size = 0x4000, scoped, tag = 'input window, operand 1']
    #allocation7 [shape = 's32[2]{0}', space=sflag, size = 0x8, scoped, tag = 'scoped memory for tpu_custom_call.1']
    #allocation8 [shape = 'u8[327680]{0}', space=vmem, size = 0x50000, scoped, tag = 'input window, operand 4, single buffered']
    #allocation9 [shape = 'u8[8192]{0}', space=vmem, size = 0x2000, scoped, tag = 'output window, operand 0']
    %11 = vsyncpa [#allocation4], 0
    %s12 = scalar_lea.sflag [#allocation4], 1
    %13 = vsyncpa %s12, 0
    %14 = vsyncpa [#allocation7], 0
    %s15 = scalar_lea.sflag [#allocation7], 1
    %16 = vsyncpa %s15, 0
    %17 = vsyncpa [#allocation5], 0
    %s18 = scalar_lea.sflag [#allocation5], 1
    %19 = vsyncpa %s18, 0
    loop: start=0, step=1, limit=8
    $region2: #{tpu_custom_call.1} parent=1 // loop_pre_header
      _
    $region3: #{tpu_custom_call.1} parent=1 // loop_header
      %s21 = sphi 0, %s25
      %p22 = scmp.ge.s32.totalorder %s21, 8
      %s28 = sphi 0, %s40
      %s29 = sphi 0, %s36
      %s30 = sphi 0, %s28
      %s31 = sphi 0, %s29
      %s32 = sphi 0, %s30
      %s33 = sphi 0, %s31
      %s45 = sphi 0, %s47
      %s48 = sphi 0, %s45
      %s49 = sphi 0, %s48
      %s65 = sphi 0, %s49
      %s73 = sphi 0, %s75
      %s76 = sphi 0, %s73
      %s77 = sphi 0, %s76
      %s93 = sphi 0, %s77
      %s97 = sphi 0, %s97
      %s99 = sphi 0, %s97
      %s100 = sphi 0, %s99
      %s114 = sphi 0, %s100
      %s118 = sphi 0, %s118
      %s120 = sphi 0, %s118
      %s121 = sphi 0, %s120
      %s135 = sphi 0, %s121
      %s139 = sphi 0, %s139
      %s141 = sphi 0, %s139
      %s142 = sphi 0, %s141
      %s156 = sphi 0, %s142
      %s160 = sphi 0, %s160
      %s162 = sphi 0, %s160
      %s163 = sphi 0, %s162
      %s177 = sphi 0, %s163
      %s185 = sphi 0, %s187
      %s188 = sphi 0, %s185
      %s189 = sphi 0, %s188
      %s205 = sphi 0, %s189
    $region4: #{tpu_custom_call.1} parent=1 // loop_header_branch
      %24 = sbr.rel (%p22) target = $region8
    $region5: #{tpu_custom_call.1} parent=1 // loop_body
      %s26 = ssub.s32 %s21, 1
      %s27 = ssub.s32 %s21, 2
      %s34 = sadd.s32 1, %s29
      %p35 = scmp.ge.s32.totalorder %s34, 3
      %s36 = scalar_select %p35, 0, %s34
      %s37 = sadd.s32 1, %s28
      %s38 = scalar_select %p35, %s37, %s28
      %p39 = scmp.ge.s32.totalorder %s38, 2
      %s40 = scalar_select %p39, 0, %s38
      %s41 = ssub.s32 %s28, %s40
      %s42 = ssub.s32 %s29, %s36
      %s43 = sor.u32 %s41, %s42
      %p44 = scmp.eq.s32.totalorder %s43, 0
      %s46 = sadd.s32 %s45, 1
      %s47 = scalar_select %p44, %s45, %s46
      %p50 = pneg %p44
      %p51 = scmp.eq.s32.totalorder %s21, 5
      %p52 = por %p50, %p51
      %p53 = scmp.ne.s32.totalorder %s45, %s48
      %p54 = scmp.eq.s32.totalorder %s21, 0
      %p55 = por %p53, %p54
      %p56 = scmp.ne.s32.totalorder %s45, %s48
      %p57 = scmp.eq.s32.totalorder %s26, 5
      %p58 = por %p56, %p57
      %p59 = scmp.ne.s32.totalorder %s48, %s49
      %p60 = scmp.eq.s32.totalorder %s26, 0
      %p61 = por %p59, %p60
      %p62 = scmp.ne.s32.totalorder %s48, %s49
      %p63 = scmp.eq.s32.totalorder %s27, 5
      %p64 = por %p62, %p63
      %p66 = scmp.ne.s32.totalorder %s49, %s65
      %p67 = scmp.eq.s32.totalorder %s27, 0
      %p68 = por %p66, %p67
      %s69 = ssub.s32 %s28, %s40
      %s70 = ssub.s32 %s29, %s36
      %s71 = sor.u32 %s69, %s70
      %p72 = scmp.eq.s32.totalorder %s71, 0
      %s74 = sadd.s32 %s73, 1
      %s75 = scalar_select %p72, %s73, %s74
      %p78 = pneg %p72
      %p79 = scmp.eq.s32.totalorder %s21, 5
      %p80 = por %p78, %p79
      %p81 = scmp.ne.s32.totalorder %s73, %s76
      %p82 = scmp.eq.s32.totalorder %s21, 0
      %p83 = por %p81, %p82
      %p84 = scmp.ne.s32.totalorder %s73, %s76
      %p85 = scmp.eq.s32.totalorder %s26, 5
      %p86 = por %p84, %p85
      %p87 = scmp.ne.s32.totalorder %s76, %s77
      %p88 = scmp.eq.s32.totalorder %s26, 0
      %p89 = por %p87, %p88
      %p90 = scmp.ne.s32.totalorder %s76, %s77
      %p91 = scmp.eq.s32.totalorder %s27, 5
      %p92 = por %p90, %p91
      %p94 = scmp.ne.s32.totalorder %s77, %s93
      %p95 = scmp.eq.s32.totalorder %s27, 0
      %p96 = por %p94, %p95
      %s98 = sadd.s32 %s97, 1
      %p101 = scmp.eq.s32.totalorder %s21, 5
      %p102 = scmp.ne.s32.totalorder %s97, %s99
      %p103 = scmp.eq.s32.totalorder %s21, 0
      %p104 = por %p102, %p103
      %p105 = scmp.ne.s32.totalorder %s97, %s99
      %p106 = scmp.eq.s32.totalorder %s26, 5
      %p107 = por %p105, %p106
      %p108 = scmp.ne.s32.totalorder %s99, %s100
      %p109 = scmp.eq.s32.totalorder %s26, 0
      %p110 = por %p108, %p109
      %p111 = scmp.ne.s32.totalorder %s99, %s100
      %p112 = scmp.eq.s32.totalorder %s27, 5
      %p113 = por %p111, %p112
      %p115 = scmp.ne.s32.totalorder %s100, %s114
      %p116 = scmp.eq.s32.totalorder %s27, 0
      %p117 = por %p115, %p116
      %s119 = sadd.s32 %s118, 1
      %p122 = scmp.eq.s32.totalorder %s21, 5
      %p123 = scmp.ne.s32.totalorder %s118, %s120
      %p124 = scmp.eq.s32.totalorder %s21, 0
      %p125 = por %p123, %p124
      %p126 = scmp.ne.s32.totalorder %s118, %s120
      %p127 = scmp.eq.s32.totalorder %s26, 5
      %p128 = por %p126, %p127
      %p129 = scmp.ne.s32.totalorder %s120, %s121
      %p130 = scmp.eq.s32.totalorder %s26, 0
      %p131 = por %p129, %p130
      %p132 = scmp.ne.s32.totalorder %s120, %s121
      %p133 = scmp.eq.s32.totalorder %s27, 5
      %p134 = por %p132, %p133
      %p136 = scmp.ne.s32.totalorder %s121, %s135
      %p137 = scmp.eq.s32.totalorder %s27, 0
      %p138 = por %p136, %p137
      %s140 = sadd.s32 %s139, 1
      %p143 = scmp.eq.s32.totalorder %s21, 5
      %p144 = scmp.ne.s32.totalorder %s139, %s141
      %p145 = scmp.eq.s32.totalorder %s21, 0
      %p146 = por %p144, %p145
      %p147 = scmp.ne.s32.totalorder %s139, %s141
      %p148 = scmp.eq.s32.totalorder %s26, 5
      %p149 = por %p147, %p148
      %p150 = scmp.ne.s32.totalorder %s141, %s142
      %p151 = scmp.eq.s32.totalorder %s26, 0
      %p152 = por %p150, %p151
      %p153 = scmp.ne.s32.totalorder %s141, %s142
      %p154 = scmp.eq.s32.totalorder %s27, 5
      %p155 = por %p153, %p154
      %p157 = scmp.ne.s32.totalorder %s142, %s156
      %p158 = scmp.eq.s32.totalorder %s27, 0
      %p159 = por %p157, %p158
      %s161 = sadd.s32 %s160, 1
      %p164 = scmp.eq.s32.totalorder %s21, 5
      %p165 = scmp.ne.s32.totalorder %s160, %s162
      %p166 = scmp.eq.s32.totalorder %s21, 0
      %p167 = por %p165, %p166
      %p168 = scmp.ne.s32.totalorder %s160, %s162
      %p169 = scmp.eq.s32.totalorder %s26, 5
      %p170 = por %p168, %p169
      %p171 = scmp.ne.s32.totalorder %s162, %s163
      %p172 = scmp.eq.s32.totalorder %s26, 0
      %p173 = por %p171, %p172
      %p174 = scmp.ne.s32.totalorder %s162, %s163
      %p175 = scmp.eq.s32.totalorder %s27, 5
      %p176 = por %p174, %p175
      %p178 = scmp.ne.s32.totalorder %s163, %s177
      %p179 = scmp.eq.s32.totalorder %s27, 0
      %p180 = por %p178, %p179
      %s181 = ssub.s32 %s28, %s40
      %s182 = ssub.s32 %s29, %s36
      %s183 = sor.u32 %s181, %s182
      %p184 = scmp.eq.s32.totalorder %s183, 0
      %s186 = sadd.s32 %s185, 1
      %s187 = scalar_select %p184, %s185, %s186
      %p190 = pneg %p184
      %p191 = scmp.eq.s32.totalorder %s21, 5
      %p192 = por %p190, %p191
      %p193 = scmp.ne.s32.totalorder %s185, %s188
      %p194 = scmp.eq.s32.totalorder %s21, 0
      %p195 = por %p193, %p194
      %p196 = scmp.ne.s32.totalorder %s185, %s188
      %p197 = scmp.eq.s32.totalorder %s26, 5
      %p198 = por %p196, %p197
      %p199 = scmp.ne.s32.totalorder %s188, %s189
      %p200 = scmp.eq.s32.totalorder %s26, 0
      %p201 = por %p199, %p200
      %p202 = scmp.ne.s32.totalorder %s188, %s189
      %p203 = scmp.eq.s32.totalorder %s27, 5
      %p204 = por %p202, %p203
      %p206 = scmp.ne.s32.totalorder %s189, %s205
      %p207 = scmp.eq.s32.totalorder %s27, 0
      %p208 = por %p206, %p207
      %p209 = scmp.le.s32.totalorder 1, %s21
      %p210 = scmp.lt.s32.totalorder %s21, 7
      %p211 = pnand %p209, %p210
      %p212 = pneg %p211
      // Predicated region
      $region9: #{tpu_custom_call.1} parent=5 // pred_check
        _
      $region10: #{tpu_custom_call.1} parent=5 // pred_check_branch
        %214 = sbr.rel (%p211) target = $region12
      $region11: #{tpu_custom_call.1} parent=5 // pred_region
        %s215 = ssub.s32 %s21, 1
        // Predicated region
        $region13: #{tpu_custom_call.1} parent=11 // pred_check
          %p216 = pneg %p110
        $region14: #{tpu_custom_call.1} parent=11 // pred_check_branch
          %218 = sbr.rel (%p216) target = $region16
        $region15: #{tpu_custom_call.1} parent=11 // pred_region
          _
        $region16: #{tpu_custom_call.1} parent=11 // pred_fallthru
          _
        // Predicated region
        $region17: #{tpu_custom_call.1} parent=11 // pred_check
          %p219 = pneg %p131
        $region18: #{tpu_custom_call.1} parent=11 // pred_check_branch
          %221 = sbr.rel (%p219) target = $region20
        $region19: #{tpu_custom_call.1} parent=11 // pred_region
          _
        $region20: #{tpu_custom_call.1} parent=11 // pred_fallthru
          _
        // Predicated region
        $region21: #{tpu_custom_call.1} parent=11 // pred_check
          %p222 = pneg %p152
        $region22: #{tpu_custom_call.1} parent=11 // pred_check_branch
          %224 = sbr.rel (%p222) target = $region24
        $region23: #{tpu_custom_call.1} parent=11 // pred_region
          %226 = vsyncadd [#allocation7], 0
          %s227 = sshll.u32 %s4, 4
          %s228 = int_to_ptr.hbm [resolvable:$true] %s227
          %s229 = sshll.u32 [#allocation8], 4
          %s230 = int_to_ptr.vmem [resolvable:$true] %s229
          %235 = dma.hbm_to_vmem [thread:$0]  %s228, 10240, %s230, [#allocation7], 128, 128, 8
        $region24: #{tpu_custom_call.1} parent=11 // pred_fallthru
          _
        // Predicated region
        $region25: #{tpu_custom_call.1} parent=11 // pred_check
          %p236 = pneg %p173
        $region26: #{tpu_custom_call.1} parent=11 // pred_check_branch
          %238 = sbr.rel (%p236) target = $region28
        $region27: #{tpu_custom_call.1} parent=11 // pred_region
          _
        $region28: #{tpu_custom_call.1} parent=11 // pred_fallthru
          _
      $region12: #{tpu_custom_call.1} parent=5 // pred_fallthru
        _
      %p239 = scmp.lt.s32.totalorder %s21, 6
      // Predicated region
      $region29: #{tpu_custom_call.1} parent=5 // pred_check
        %p240 = pneg %p239
      $region30: #{tpu_custom_call.1} parent=5 // pred_check_branch
        %242 = sbr.rel (%p240) target = $region32
      $region31: #{tpu_custom_call.1} parent=5 // pred_region
        // Predicated region
        $region33: #{tpu_custom_call.1} parent=31 // pred_check
          %p243 = pneg %p55
        $region34: #{tpu_custom_call.1} parent=31 // pred_check_branch
          %245 = sbr.rel (%p243) target = $region36
        $region35: #{tpu_custom_call.1} parent=31 // pred_region
          %s246 = sand.u32 %s45, 1
          %s247 = scalar_lea.sflag [#allocation4], %s246
          %s248 = sand.u32 %s45, 1
          %s249 = smul.addr %s248, 8
          %s250 = scalar_lea.vmem [#allocation3], %s249
          %252 = vsyncadd %s247, 0
          %s253 = smul.addr %s28, 3
          %s254 = sadd.s32 %s29, %s253
          %s255 = smul.addr %s254, 8
          %s256 = scalar_lea.hbm %s0, %s255
          %s258 = sshll.u32 %s256, 4
          %s259 = int_to_ptr.hbm [resolvable:$true] %s258
          %s260 = sshll.u32 %s250, 4
          %s261 = int_to_ptr.vmem [resolvable:$true] %s260
          %263 = dma.hbm_to_vmem [thread:$0]  %s259, 128, %s261, %s247
        $region36: #{tpu_custom_call.1} parent=31 // pred_fallthru
          _
        // Predicated region
        $region37: #{tpu_custom_call.1} parent=31 // pred_check
          %p264 = pneg %p83
        $region38: #{tpu_custom_call.1} parent=31 // pred_check_branch
          %266 = sbr.rel (%p264) target = $region40
        $region39: #{tpu_custom_call.1} parent=31 // pred_region
          %s267 = sand.u32 %s21, 1
          %s268 = scalar_lea.sflag [#allocation7], %s267
          %s269 = sand.u32 %s73, 1
          %s270 = smul.addr %s269, 16
          %s271 = scalar_lea.vmem [#allocation6], %s270
          %273 = vsyncadd %s268, 0
          %s274 = smul.addr %s29, 2
          %s275 = smul.addr %s28, 6
          %s276 = sadd.s32 %s274, %s275
          %s277 = smul.addr %s276, 8
          %s278 = scalar_lea.hbm %s1, %s277
          %s279 = sshll.u32 %s278, 4
          %s280 = int_to_ptr.hbm [resolvable:$true] %s279
          %s281 = sshll.u32 %s271, 4
          %s282 = int_to_ptr.vmem [resolvable:$true] %s281
          %287 = dma.hbm_to_vmem [thread:$0]  %s280, 256, %s282, %s268, 128, 128, 8
        $region40: #{tpu_custom_call.1} parent=31 // pred_fallthru
          _
      $region32: #{tpu_custom_call.1} parent=5 // pred_fallthru
        _
      %p288 = scmp.le.s32.totalorder 1, %s21
      %p289 = scmp.lt.s32.totalorder %s21, 7
      %p290 = pnand %p288, %p289
      %p291 = pneg %p290
      // Predicated region
      $region41: #{tpu_custom_call.1} parent=5 // pred_check
        _
      $region42: #{tpu_custom_call.1} parent=5 // pred_check_branch
        %293 = sbr.rel (%p290) target = $region44
      $region43: #{tpu_custom_call.1} parent=5 // pred_region
        %s294 = ssub.s32 %s21, 1
        %s295 = sand.u32 %s48, 1
        %s296 = scalar_lea.sflag [#allocation4], %s295
        %s297 = sand.u32 %s48, 1
        %s298 = smul.addr %s297, 8
        %s299 = scalar_lea.vmem [#allocation3], %s298
        // Predicated region
        $region45: #{tpu_custom_call.1} parent=43 // pred_check
          %p300 = pneg %p61
        $region46: #{tpu_custom_call.1} parent=43 // pred_check_branch
          %302 = sbr.rel (%p300) target = $region48
        $region47: #{tpu_custom_call.1} parent=43 // pred_region
          %304 = dma.done %s296, 128
        $region48: #{tpu_custom_call.1} parent=43 // pred_fallthru
          _
        %s305 = sand.u32 %s26, 1
        %s306 = scalar_lea.sflag [#allocation7], %s305
        %s307 = sand.u32 %s76, 1
        %s308 = smul.addr %s307, 16
        %s309 = scalar_lea.vmem [#allocation6], %s308
        // Predicated region
        $region49: #{tpu_custom_call.1} parent=43 // pred_check
          %p310 = pneg %p89
        $region50: #{tpu_custom_call.1} parent=43 // pred_check_branch
          %312 = sbr.rel (%p310) target = $region52
        $region51: #{tpu_custom_call.1} parent=43 // pred_region
          %314 = dma.done %s306, 256
        $region52: #{tpu_custom_call.1} parent=43 // pred_fallthru
          _
        // Predicated region
        $region53: #{tpu_custom_call.1} parent=43 // pred_check
          %p315 = pneg %p152
        $region54: #{tpu_custom_call.1} parent=43 // pred_check_branch
          %317 = sbr.rel (%p315) target = $region56
        $region55: #{tpu_custom_call.1} parent=43 // pred_region
          %319 = dma.done [#allocation7], 10240
        $region56: #{tpu_custom_call.1} parent=43 // pred_fallthru
          _
        %s320 = sand.u32 %s48, 1
        %s321 = scalar_lea.sflag [#allocation4], %s320
        %s322 = sand.u32 %s48, 1
        %s323 = smul.addr %s322, 8
        %s324 = scalar_lea.vmem [#allocation3], %s323
        %p325 = pneg %p61
        %p326 = pneg %p58
        %s327 = sand.u32 %s26, 1
        %s328 = scalar_lea.sflag [#allocation7], %s327
        %s329 = sand.u32 %s76, 1
        %s330 = smul.addr %s329, 16
        %s331 = scalar_lea.vmem [#allocation6], %s330
        %p332 = pneg %p89
        %p333 = pneg %p86
        %p334 = pneg %p110
        %p335 = pneg %p107
        %p336 = pneg %p131
        %p337 = pneg %p128
        %p338 = pneg %p152
        %p339 = pneg %p149
        %p340 = pneg %p173
        %p341 = pneg %p170
        %p342 = pneg %p201
        %p343 = pneg %p198
        %s344 = sand.u32 %s188, 1
        %s345 = scalar_lea.sflag [#allocation5], %s344
        %s346 = sand.u32 %s188, 1
        %s347 = smul.addr %s346, 8
        %s348 = scalar_lea.vmem [#allocation9], %s347
        %v349 = vld [vmem:[%s2] sm:$0x1]
        %v350 = vld [vmem:[%s3] sm:$0x1]
        %v351 = vld [vmem:[%s299] sm:$0xff]
        %v353 = vperm.slane %v349, 0
        %v355 = vmul.f32 %v351, %v353
        %v357 = vperm.slane %v350, 0
        %v359 = vadd.f32 %v355, %v357
        %v360 = vmul.f32 %v359, 0.5
        %v361 = vmul.f32 %v359, 0.044715
        %v362 = vmul.f32 %v361, %v359
        %v363 = vmul.f32 %v362, %v359
        %v364 = vadd.f32 %v359, %v363
        %v365 = vmul.f32 %v364, 0.7978846
        %v366 = vtanh.pop %v365
        %v367 = vadd.f32 %v366, 1.0
        %v368 = vmul.f32 %v360, %v367
        %p369 = scmp.eq.s32.totalorder %s31, 2
        // Predicated region
        $region57: #{tpu_custom_call.1} parent=43 // pred_check
          %p370 = pneg %p369
        $region58: #{tpu_custom_call.1} parent=43 // pred_check_branch
          %372 = sbr.rel (%p370) target = $region60
        $region59: #{tpu_custom_call.1} parent=43 // pred_region
          %v373 = vlaneseq
          %v374 = vshrl.u32 %v373, 7
          %s375 = smul.u32 %s31, 8
          %v376 = vstv %s375
          %v377 = vadd.s32 %v374, %v376
          %vm378 = vcmp.lt.s32.totalorder %v377, 20
          %v379 = vsel %vm378, 1, 0
          %vm380 = vcmp.eq.s32.totalorder %v379, 1
          %v381 = vsel %vm380, %v368, 0.0
          %382 = vst [vmem:[#allocation2 + $0x8] sm:$0xff] %v381
        $region60: #{tpu_custom_call.1} parent=43 // pred_fallthru
          _
        %p383 = scmp.ne.s32.totalorder %s31, 2
        // Predicated region
        $region61: #{tpu_custom_call.1} parent=43 // pred_check
          %p384 = pneg %p383
        $region62: #{tpu_custom_call.1} parent=43 // pred_check_branch
          %386 = sbr.rel (%p384) target = $region64
        $region63: #{tpu_custom_call.1} parent=43 // pred_region
          %387 = vst [vmem:[#allocation2 + $0x8] sm:$0xff] %v368
        $region64: #{tpu_custom_call.1} parent=43 // pred_fallthru
          _
        %v388 = vld [vmem:[%s309] sm:$0xff]
        %v389 = vld [vmem:[%s309 + $0x8] sm:$0xff]
        %v390 = vmul.f32 %v388, %v353
        %v391 = vmul.f32 %v389, %v353
        %v392 = vadd.f32 %v390, %v357
        %v393 = vadd.f32 %v391, %v357
        %v394 = vmul.f32 %v392, 0.5
        %v395 = vmul.f32 %v393, 0.5
        %v396 = vmul.f32 %v392, 0.044715
        %v397 = vmul.f32 %v393, 0.044715
        %v398 = vmul.f32 %v396, %v392
        %v399 = vmul.f32 %v397, %v393
        %v400 = vmul.f32 %v398, %v392
        %v401 = vmul.f32 %v399, %v393
        %v402 = vadd.f32 %v392, %v400
        %v403 = vadd.f32 %v393, %v401
        %v404 = vmul.f32 %v402, 0.7978846
        %v405 = vmul.f32 %v403, 0.7978846
        %v406 = vtanh.pop %v404
        %v407 = vtanh.pop %v405
        %v408 = vadd.f32 %v406, 1.0
        %v409 = vadd.f32 %v407, 1.0
        %v410 = vmul.f32 %v394, %v408
        %v411 = vmul.f32 %v395, %v409
        %v412 = vlaneseq
        %v413 = vshrl.u32 %v412, 7
        %v414 = vadd.s32 %v413, 8
        %s415 = smul.u32 %s31, 8
        %s416 = ssub.s32 %s415, 8
        %v417 = vstv %s416
        %v418 = vadd.s32 %v417, %v413
        %v419 = vadd.s32 %v417, %v414
        %vm420 = vcmp.lt.s32.totalorder %v413, 8
        %vm421 = vcmp.lt.s32.totalorder %v414, 8
        %v422 = vsel %vm420, 0, 8
        %v423 = vsel %vm421, 0, 8
        %v424 = vadd.s32 %v418, %v422
        %v425 = vadd.s32 %v419, %v423
        %vm426 = vcmp.ge.s32.totalorder %v424, 0
        %vm427 = vcmp.ge.s32.totalorder %v425, 0
        %vm428 = vcmp.lt.s32.totalorder %v424, 20
        %vm429 = vcmp.lt.s32.totalorder %v425, 20
        %vm430 = vmand %vm426, %vm428
        %vm431 = vmand %vm427, %vm429
        %v432 = vsel %vm430, 1, 0
        %v433 = vsel %vm431, 1, 0
        %vm434 = vcmp.eq.s32.totalorder %v432, 1
        %vm435 = vcmp.eq.s32.totalorder %v433, 1
        %v436 = vsel %vm434, %v410, 0.0
        %v437 = vsel %vm435, %v411, 0.0
        %438 = vst [vmem:[#allocation2] sm:$0xff] %v436
        %439 = vst [vmem:[#allocation2 + $0x10] sm:$0xff] %v437
        %v440 = vld [vmem:[#allocation2 + $0x6] sm:$0xff]
        %v441 = vld [vmem:[#allocation2 + $0x7] sm:$0xff]
        %v442 = vld [vmem:[#allocation2 + $0x8] sm:$0xff]
        %v443 = vld [vmem:[#allocation2 + $0x9] sm:$0xff]
        %v444 = vld [vmem:[#allocation2 + $0xa] sm:$0xff]
        %v445 = vld [vmem:[#allocation8] sm:$0xff]
        %v446 = vld [vmem:[#allocation8 + $0x8] sm:$0xff]
        %v447 = vld [vmem:[#allocation8 + $0x10] sm:$0xff]
        %v448 = vld [vmem:[#allocation8 + $0x18] sm:$0xff]
        %v449 = vld [vmem:[#allocation8 + $0x20] sm:$0xff]
        %v450 = vld [vmem:[#allocation8 + $0x28] sm:$0xff]
        %v451 = vld [vmem:[#allocation8 + $0x30] sm:$0xff]
        %v452 = vld [vmem:[#allocation8 + $0x38] sm:$0xff]
        %v453 = vld [vmem:[#allocation8 + $0x40] sm:$0xff]
        %v454 = vld [vmem:[#allocation8 + $0x48] sm:$0xff]
        %v455 = vld [vmem:[#allocation8 + $0x50] sm:$0xff]
        %v456 = vld [vmem:[#allocation8 + $0x58] sm:$0xff]
        %v457 = vld [vmem:[#allocation8 + $0x60] sm:$0xff]
        %v458 = vld [vmem:[#allocation8 + $0x68] sm:$0xff]
        %v459 = vld [vmem:[#allocation8 + $0x70] sm:$0xff]
        %v460 = vld [vmem:[#allocation8 + $0x78] sm:$0xff]
        %v461 = vld [vmem:[#allocation8 + $0x80] sm:$0xff]
        %v462 = vld [vmem:[#allocation8 + $0x88] sm:$0xff]
        %v463 = vld [vmem:[#allocation8 + $0x90] sm:$0xff]
        %v464 = vld [vmem:[#allocation8 + $0x98] sm:$0xff]
        %v465 = vld [vmem:[#allocation8 + $0xa0] sm:$0xff]
        %v466 = vld [vmem:[#allocation8 + $0xa8] sm:$0xff]
        %v467 = vld [vmem:[#allocation8 + $0xb0] sm:$0xff]
        %v468 = vld [vmem:[#allocation8 + $0xb8] sm:$0xff]
        %v469 = vld [vmem:[#allocation8 + $0xc0] sm:$0xff]
        %v470 = vld [vmem:[#allocation8 + $0xc8] sm:$0xff]
        %v471 = vld [vmem:[#allocation8 + $0xd0] sm:$0xff]
        %v472 = vld [vmem:[#allocation8 + $0xd8] sm:$0xff]
        %v473 = vld [vmem:[#allocation8 + $0xe0] sm:$0xff]
        %v474 = vld [vmem:[#allocation8 + $0xe8] sm:$0xff]
        %v475 = vld [vmem:[#allocation8 + $0xf0] sm:$0xff]
        %v476 = vld [vmem:[#allocation8 + $0xf8] sm:$0xff]
        %v477 = vld [vmem:[#allocation8 + $0x100] sm:$0xff]
        %v478 = vld [vmem:[#allocation8 + $0x108] sm:$0xff]
        %v479 = vld [vmem:[#allocation8 + $0x110] sm:$0xff]
        %v480 = vld [vmem:[#allocation8 + $0x118] sm:$0xff]
        %v481 = vld [vmem:[#allocation8 + $0x120] sm:$0xff]
        %v482 = vld [vmem:[#allocation8 + $0x128] sm:$0xff]
        %v483 = vld [vmem:[#allocation8 + $0x130] sm:$0xff]
        %v484 = vld [vmem:[#allocation8 + $0x138] sm:$0xff]
        %v485 = vld [vmem:[#allocation8 + $0x140] sm:$0xff]
        %v486 = vld [vmem:[#allocation8 + $0x148] sm:$0xff]
        %v487 = vld [vmem:[#allocation8 + $0x150] sm:$0xff]
        %v488 = vld [vmem:[#allocation8 + $0x158] sm:$0xff]
        %v489 = vld [vmem:[#allocation8 + $0x160] sm:$0xff]
        %v490 = vld [vmem:[#allocation8 + $0x168] sm:$0xff]
        %v491 = vld [vmem:[#allocation8 + $0x170] sm:$0xff]
        %v492 = vld [vmem:[#allocation8 + $0x178] sm:$0xff]
        %v493 = vld [vmem:[#allocation8 + $0x180] sm:$0xff]
        %v494 = vld [vmem:[#allocation8 + $0x188] sm:$0xff]
        %v495 = vld [vmem:[#allocation8 + $0x190] sm:$0xff]
        %v496 = vld [vmem:[#allocation8 + $0x198] sm:$0xff]
        %v497 = vld [vmem:[#allocation8 + $0x1a0] sm:$0xff]
        %v498 = vld [vmem:[#allocation8 + $0x1a8] sm:$0xff]
        %v499 = vld [vmem:[#allocation8 + $0x1b0] sm:$0xff]
        %v500 = vld [vmem:[#allocation8 + $0x1b8] sm:$0xff]
        %v501 = vld [vmem:[#allocation8 + $0x1c0] sm:$0xff]
        %v502 = vld [vmem:[#allocation8 + $0x1c8] sm:$0xff]
        %v503 = vld [vmem:[#allocation8 + $0x1d0] sm:$0xff]
        %v504 = vld [vmem:[#allocation8 + $0x1d8] sm:$0xff]
        %v505 = vld [vmem:[#allocation8 + $0x1e0] sm:$0xff]
        %v506 = vld [vmem:[#allocation8 + $0x1e8] sm:$0xff]
        %v507 = vld [vmem:[#allocation8 + $0x1f0] sm:$0xff]
        %v508 = vld [vmem:[#allocation8 + $0x1f8] sm:$0xff]
        %v509 = vld [vmem:[#allocation8 + $0x200] sm:$0xff]
        %v510 = vld [vmem:[#allocation8 + $0x208] sm:$0xff]
        %v511 = vld [vmem:[#allocation8 + $0x210] sm:$0xff]
        %v512 = vld [vmem:[#allocation8 + $0x218] sm:$0xff]
        %v513 = vld [vmem:[#allocation8 + $0x220] sm:$0xff]
        %v514 = vld [vmem:[#allocation8 + $0x228] sm:$0xff]
        %v515 = vld [vmem:[#allocation8 + $0x230] sm:$0xff]
        %v516 = vld [vmem:[#allocation8 + $0x238] sm:$0xff]
        %v517 = vld [vmem:[#allocation8 + $0x240] sm:$0xff]
        %v518 = vld [vmem:[#allocation8 + $0x248] sm:$0xff]
        %v519 = vld [vmem:[#allocation8 + $0x250] sm:$0xff]
        %v520 = vld [vmem:[#allocation8 + $0x258] sm:$0xff]
        %v521 = vld [vmem:[#allocation8 + $0x260] sm:$0xff]
        %v522 = vld [vmem:[#allocation8 + $0x268] sm:$0xff]
        %v523 = vld [vmem:[#allocation8 + $0x270] sm:$0xff]
        %v524 = vld [vmem:[#allocation8 + $0x278] sm:$0xff]
        %v525 = vld [vmem:[%s5] sm:$0x1]
        %v527 = vperm.slane %v525, 0
        %529 = vmatpush.msra.mxu0 %v460
        %530 = vmatpush.msra.mxu0 %v459
        %531 = vmatpush.msra.mxu0 %v458
        %532 = vmatpush.msra.mxu0 %v457
        %533 = vmatpush.msra.mxu0 %v456
        %534 = vmatpush.msra.mxu0 %v455
        %535 = vmatpush.msra.mxu0 %v454
        %536 = vmatpush.msra.mxu0 %v453
        %537 = vmatpush.msra.mxu0 %v452
        %538 = vmatpush.msra.mxu0 %v451
        %539 = vmatpush.msra.mxu0 %v450
        %540 = vmatpush.msra.mxu0 %v449
        %541 = vmatpush.msra.mxu0 %v448
        %542 = vmatpush.msra.mxu0 %v447
        %543 = vmatpush.msra.mxu0 %v446
        %544 = vmatpush.msra.mxu0 %v445
        %545 = vmatmul.f32.gmra.mxu0 %v440
        %v546 = vpop.f32.mrf.mxu0
        %v547 = vadd.f32 %v527, %v546
        %548 = vdwg.mxu0
        %549 = vmatpush.msra.mxu0 %v476
        %550 = vmatpush.msra.mxu0 %v475
        %551 = vmatpush.msra.mxu0 %v474
        %552 = vmatpush.msra.mxu0 %v473
        %553 = vmatpush.msra.mxu0 %v472
        %554 = vmatpush.msra.mxu0 %v471
        %555 = vmatpush.msra.mxu0 %v470
        %556 = vmatpush.msra.mxu0 %v469
        %557 = vmatpush.msra.mxu0 %v468
        %558 = vmatpush.msra.mxu0 %v467
        %559 = vmatpush.msra.mxu0 %v466
        %560 = vmatpush.msra.mxu0 %v465
        %561 = vmatpush.msra.mxu0 %v464
        %562 = vmatpush.msra.mxu0 %v463
        %563 = vmatpush.msra.mxu0 %v462
        %564 = vmatpush.msra.mxu0 %v461
        %565 = vmatmul.f32.gmra.mxu0 %v441
        %v566 = vpop.f32.mrf.mxu0
        %v567 = vadd.f32 %v547, %v566
        %568 = vdwg.mxu0
        %569 = vmatpush.msra.mxu0 %v492
        %570 = vmatpush.msra.mxu0 %v491
        %571 = vmatpush.msra.mxu0 %v490
        %572 = vmatpush.msra.mxu0 %v489
        %573 = vmatpush.msra.mxu0 %v488
        %574 = vmatpush.msra.mxu0 %v487
        %575 = vmatpush.msra.mxu0 %v486
        %576 = vmatpush.msra.mxu0 %v485
        %577 = vmatpush.msra.mxu0 %v484
        %578 = vmatpush.msra.mxu0 %v483
        %579 = vmatpush.msra.mxu0 %v482
        %580 = vmatpush.msra.mxu0 %v481
        %581 = vmatpush.msra.mxu0 %v480
        %582 = vmatpush.msra.mxu0 %v479
        %583 = vmatpush.msra.mxu0 %v478
        %584 = vmatpush.msra.mxu0 %v477
        %585 = vmatmul.f32.gmra.mxu0 %v442
        %v586 = vpop.f32.mrf.mxu0
        %v587 = vadd.f32 %v567, %v586
        %588 = vdwg.mxu0
        %589 = vmatpush.msra.mxu0 %v508
        %590 = vmatpush.msra.mxu0 %v507
        %591 = vmatpush.msra.mxu0 %v506
        %592 = vmatpush.msra.mxu0 %v505
        %593 = vmatpush.msra.mxu0 %v504
        %594 = vmatpush.msra.mxu0 %v503
        %595 = vmatpush.msra.mxu0 %v502
        %596 = vmatpush.msra.mxu0 %v501
        %597 = vmatpush.msra.mxu0 %v500
        %598 = vmatpush.msra.mxu0 %v499
        %599 = vmatpush.msra.mxu0 %v498
        %600 = vmatpush.msra.mxu0 %v497
        %601 = vmatpush.msra.mxu0 %v496
        %602 = vmatpush.msra.mxu0 %v495
        %603 = vmatpush.msra.mxu0 %v494
        %604 = vmatpush.msra.mxu0 %v493
        %605 = vmatmul.f32.gmra.mxu0 %v443
        %v606 = vpop.f32.mrf.mxu0
        %v607 = vadd.f32 %v587, %v606
        %608 = vdwg.mxu0
        %609 = vmatpush.msra.mxu0 %v524
        %610 = vmatpush.msra.mxu0 %v523
        %611 = vmatpush.msra.mxu0 %v522
        %612 = vmatpush.msra.mxu0 %v521
        %613 = vmatpush.msra.mxu0 %v520
        %614 = vmatpush.msra.mxu0 %v519
        %615 = vmatpush.msra.mxu0 %v518
        %616 = vmatpush.msra.mxu0 %v517
        %617 = vmatpush.msra.mxu0 %v516
        %618 = vmatpush.msra.mxu0 %v515
        %619 = vmatpush.msra.mxu0 %v514
        %620 = vmatpush.msra.mxu0 %v513
        %621 = vmatpush.msra.mxu0 %v512
        %622 = vmatpush.msra.mxu0 %v511
        %623 = vmatpush.msra.mxu0 %v510
        %624 = vmatpush.msra.mxu0 %v509
        %625 = vmatmul.f32.gmra.mxu0 %v444
        %v626 = vpop.f32.mrf.mxu0
        %v627 = vadd.f32 %v607, %v626
        %628 = vdwg.mxu0
        %629 = vst [vmem:[%s348] sm:$0xff] %v627
        %s630 = sand.u32 %s188, 1
        %s631 = scalar_lea.sflag [#allocation5], %s630
        %s632 = sand.u32 %s188, 1
        %s633 = smul.addr %s632, 8
        %s634 = scalar_lea.vmem [#allocation9], %s633
        // Predicated region
        $region65: #{tpu_custom_call.1} parent=43 // pred_check
          %p635 = pneg %p198
        $region66: #{tpu_custom_call.1} parent=43 // pred_check_branch
          %637 = sbr.rel (%p635) target = $region68
        $region67: #{tpu_custom_call.1} parent=43 // pred_region
          %639 = vsyncadd %s631, 0
          %s640 = smul.addr %s30, 3
          %s641 = sadd.s32 %s31, %s640
          %s642 = smul.addr %s641, 8
          %s643 = scalar_lea.hbm %s6, %s642
          %s645 = sshll.u32 %s634, 4
          %s646 = int_to_ptr.vmem [resolvable:$true] %s645
          %s647 = sshll.u32 %s643, 4
          %s648 = int_to_ptr.hbm [resolvable:$true] %s647
          %650 = dma.vmem_to_hbm [thread:$0]  %s646, 128, %s648, %s631
        $region68: #{tpu_custom_call.1} parent=43 // pred_fallthru
          _
      $region44: #{tpu_custom_call.1} parent=5 // pred_fallthru
        _
      %p651 = scmp.le.s32.totalorder 2, %s21
      // Predicated region
      $region69: #{tpu_custom_call.1} parent=5 // pred_check
        %p652 = pneg %p651
      $region70: #{tpu_custom_call.1} parent=5 // pred_check_branch
        %654 = sbr.rel (%p652) target = $region72
      $region71: #{tpu_custom_call.1} parent=5 // pred_region
        %s655 = ssub.s32 %s21, 2
        // Predicated region
        $region73: #{tpu_custom_call.1} parent=71 // pred_check
          %p656 = pneg %p204
        $region74: #{tpu_custom_call.1} parent=71 // pred_check_branch
          %658 = sbr.rel (%p656) target = $region76
        $region75: #{tpu_custom_call.1} parent=71 // pred_region
          %s659 = sand.u32 %s189, 1
          %s660 = scalar_lea.sflag [#allocation5], %s659
          %s661 = sand.u32 %s189, 1
          %s662 = smul.addr %s661, 8
          %s663 = scalar_lea.vmem [#allocation9], %s662
          %665 = dma.done %s660, 128
        $region76: #{tpu_custom_call.1} parent=71 // pred_fallthru
          _
      $region72: #{tpu_custom_call.1} parent=5 // pred_fallthru
        _
    $region6: #{tpu_custom_call.1} parent=1 // loop_footer
      %s25 = sadd.s32 1, %s21
    $region7: #{tpu_custom_call.1} parent=1 // loop_footer_branch
      %20 = sbr.rel target = $region3
    $region8: #{tpu_custom_call.1} parent=1 // loop_exit
      _
    %666 = vsyncpa [#allocation4], 1
    %s667 = scalar_lea.sflag [#allocation4], 1
    %668 = vsyncpa %s667, 1
    %669 = vsyncpa [#allocation7], 1
    %s670 = scalar_lea.sflag [#allocation7], 1
    %671 = vsyncpa %s670, 1
    %672 = vsyncpa [#allocation5], 1
    %s673 = scalar_lea.sflag [#allocation5], 1
    %674 = vsyncpa %s673, 1

</llo_original>
